<compile_context>
chip_gen: v5e
topology: v5e:2x2
jax: 0.10.0
libtpu: 0.0.40
codegen_flags: <defaults>
</compile_context>

<pallas_src>
import functools

import jax
import jax.numpy as jnp
from jax.experimental import pallas as pl
from jax.experimental.pallas import tpu as pltpu

EPS = 1e-5


def _round_up(x, m):
    return ((x + m - 1) // m) * m


# ----------------------------------------------------------------------------
# VMEM sizing helpers (review item: VMEM-aware tiles + explicit vmem limit)
# ----------------------------------------------------------------------------
def _vmem_estimate(tk, cout_p, lbuf, hpwp):
    """Rough per-grid-step VMEM footprint (bytes) of a conv kernel."""
    x_blk = 2 * tk * lbuf * 2              # bf16 activation block, double-buffered
    w_blk = 2 * 9 * cout_p * tk * 2        # bf16 tap weights, double-buffered
    y_blk = 2 * cout_p * lbuf * 2          # bf16 output block, double-buffered
    acc = cout_p * hpwp * 4                # f32 accumulator scratch
    a_scr = tk * lbuf * 2                  # bf16 fused BN/ReLU scratch (conv2)
    masks = 2 * (hpwp + lbuf) * 4
    small = 4 * cout_p * 4 + 2 * tk * 4
    return x_blk + w_blk + y_blk + acc + a_scr + masks + small + (1 << 20)


def _vmem_limit(est_bytes):
    # Stay under v7x's 64 MiB physical VMEM; raise above the 16/32 MiB defaults.
    return int(min(max(est_bytes + (4 << 20), 32 << 20), 64 << 20))


def _pick_channel_tile(cp, cout_p, lbuf, hpwp, budget=24 << 20):
    """Largest channel chunk (multiple of 128 dividing cp, or full cp) under budget."""
    if cp % 128 != 0:
        return cp                           # must equal full dim (BlockSpec rule)
    tk = cp
    while tk > 128 and tk % 256 == 0 and _vmem_estimate(tk, cout_p, lbuf, hpwp) > budget:
        tk //= 2
    return tk


# ----------------------------------------------------------------------------
# Pallas kernels
#
# Buffer layout: for an HxW image, Wp = W+2, Hp = H+2, the zero-padded image
# is flattened row-major to Hp*Wp values placed at offset `base` inside a
# length-Lbuf buffer whose remaining entries are zero guards.  The 3x3 tap
# (ky, kx) of output window position p then reads buffer position
# base + p + (ky-1)*Wp + (kx-1), which is always in-bounds.
# ----------------------------------------------------------------------------
def _conv_bnstats_kernel(x_ref, w_ref, mwin_ref, y_ref, s_ref, q_ref, acc_ref,
                         *, base, wp, hpwp):
    # x_ref: (1, tk, Lbuf) bf16; w_ref: (9, Coutp, tk) bf16; mwin_ref: (1, HpWp)
    # y_ref: (1, Coutp, Lbuf) bf16; s_ref/q_ref: (1, Coutp, 1) f32 BN partials
    # acc_ref: (Coutp, HpWp) f32 accumulator (persists across the Cin grid axis)
    k = pl.program_id(1)

    @pl.when(k == 0)
    def _():
        acc_ref[...] = jnp.zeros_like(acc_ref)

    acc = acc_ref[...]
    t = 0
    for ky in range(3):
        for kx in range(3):
            d = (ky - 1) * wp + (kx - 1)
            xs = x_ref[0, :, pl.ds(base + d, hpwp)]          # (tk, HpWp) bf16
            acc = acc + jnp.dot(w_ref[t], xs,
                                preferred_element_type=jnp.float32)
            t += 1
    acc_ref[...] = acc

    @pl.when(k == pl.num_programs(1) - 1)
    def _():
        y = acc_ref[...]                                     # (Coutp, HpWp) f32
        m = mwin_ref[...]                                    # (1, HpWp) 0/1 mask
        ym = y * m                                           # exclude pad ring
        s_ref[...] = jnp.sum(ym, axis=1, keepdims=True).reshape(s_ref.shape)
        q_ref[...] = jnp.sum(ym * y, axis=1, keepdims=True).reshape(q_ref.shape)
        # write y1 back in guard-buffer layout with exact-zero guards
        y_ref[...] = jnp.zeros_like(y_ref)
        y_ref[0, :, pl.ds(base, hpwp)] = y.astype(y_ref.dtype)


def _bnrelu_conv_bnstats_kernel(y1_ref, mean1_ref, w_ref, mbuf_ref, mwin_ref,
                                y2_ref, s_ref, q_ref, acc_ref, a_ref,
                                *, base, wp, hpwp):
    # Fused BN1 (mean-centering; 1/std folded into w) + ReLU + pad-ring zeroing
    # on the load path, then the same 9-tap MXU accumulation, then BN2 partials.
    k = pl.program_id(1)

    @pl.when(k == 0)
    def _():
        acc_ref[...] = jnp.zeros_like(acc_ref)

    a = jnp.maximum(y1_ref[0].astype(jnp.float32) - mean1_ref[...], 0.0)
    a_ref[...] = (a * mbuf_ref[...]).astype(a_ref.dtype)     # (tk, Lbuf) bf16

    acc = acc_ref[...]
    t = 0
    for ky in range(3):
        for kx in range(3):
            d = (ky - 1) * wp + (kx - 1)
            xs = a_ref[:, pl.ds(base + d, hpwp)]             # (tk, HpWp) bf16
            acc = acc + jnp.dot(w_ref[t], xs,
                                preferred_element_type=jnp.float32)
            t += 1
    acc_ref[...] = acc

    @pl.when(k == pl.num_programs(1) - 1)
    def _():
        y = acc_ref[...]
        m = mwin_ref[...]
        ym = y * m
        s_ref[...] = jnp.sum(ym, axis=1, keepdims=True).reshape(s_ref.shape)
        q_ref[...] = jnp.sum(ym * y, axis=1, keepdims=True).reshape(q_ref.shape)
        y2_ref[0] = y.astype(y2_ref.dtype)


def _bn_relu_kernel(y_ref, scale_ref, bias_ref, o_ref):
    # y_ref: (1, C, HpWp) bf16; scale/bias: (C, 1) f32 broadcast along lanes.
    y = y_ref[0].astype(jnp.float32) * scale_ref[...] + bias_ref[...]
    o_ref[0] = jnp.maximum(y, 0.0).astype(o_ref.dtype)


# ----------------------------------------------------------------------------
# pallas_call wrappers
# ----------------------------------------------------------------------------
def conv_bnstats(x_store, w_taps, mask_win, *, H, W, base):
    n, cin_p, lbuf = x_store.shape
    _, cout_p, _ = w_taps.shape
    wp = W + 2
    hpwp = (H + 2) * wp
    tk = _pick_channel_tile(cin_p, cout_p, lbuf, hpwp)
    n_k = cin_p // tk
    est = _vmem_estimate(tk, cout_p, lbuf, hpwp)
    kern = functools.partial(_conv_bnstats_kernel, base=base, wp=wp, hpwp=hpwp)
    return pl.pallas_call(
        kern,
        out_shape=(
            jax.ShapeDtypeStruct((n, cout_p, lbuf), jnp.bfloat16),
            jax.ShapeDtypeStruct((n, cout_p, 1), jnp.float32),
            jax.ShapeDtypeStruct((n, cout_p, 1), jnp.float32),
        ),
        grid_spec=pltpu.PrefetchScalarGridSpec(
            num_scalar_prefetch=0,
            grid=(n, n_k),
            in_specs=[
                pl.BlockSpec((1, tk, lbuf), lambda b, k: (b, k, 0)),
                pl.BlockSpec((9, cout_p, tk), lambda b, k: (0, 0, k)),
                pl.BlockSpec((1, hpwp), lambda b, k: (0, 0)),
            ],
            out_specs=[
                pl.BlockSpec((1, cout_p, lbuf), lambda b, k: (b, 0, 0)),
                pl.BlockSpec((1, cout_p, 1), lambda b, k: (b, 0, 0)),
                pl.BlockSpec((1, cout_p, 1), lambda b, k: (b, 0, 0)),
            ],
            scratch_shapes=[pltpu.VMEM((cout_p, hpwp), jnp.float32)],
        ),
        compiler_params=pltpu.CompilerParams(
            dimension_semantics=("parallel", "arbitrary"),
            vmem_limit_bytes=_vmem_limit(est)),
    )(x_store, w_taps, mask_win)


def bnrelu_conv_bnstats(y1_store, mean1_col, w_taps, mask_buf, mask_win, *, H, W, base):
    n, cmid_p, lbuf = y1_store.shape
    _, cout_p, _ = w_taps.shape
    wp = W + 2
    hpwp = (H + 2) * wp
    tk = _pick_channel_tile(cmid_p, cout_p, lbuf, hpwp)
    n_k = cmid_p // tk
    est = _vmem_estimate(tk, cout_p, lbuf, hpwp)
    kern = functools.partial(_bnrelu_conv_bnstats_kernel, base=base, wp=wp, hpwp=hpwp)
    return pl.pallas_call(
        kern,
        out_shape=(
            jax.ShapeDtypeStruct((n, cout_p, hpwp), jnp.bfloat16),
            jax.ShapeDtypeStruct((n, cout_p, 1), jnp.float32),
            jax.ShapeDtypeStruct((n, cout_p, 1), jnp.float32),
        ),
        grid_spec=pltpu.PrefetchScalarGridSpec(
            num_scalar_prefetch=0,
            grid=(n, n_k),
            in_specs=[
                pl.BlockSpec((1, tk, lbuf), lambda b, k: (b, k, 0)),
                pl.BlockSpec((tk, 1), lambda b, k: (k, 0)),
                pl.BlockSpec((9, cout_p, tk), lambda b, k: (0, 0, k)),
                pl.BlockSpec((1, lbuf), lambda b, k: (0, 0)),
                pl.BlockSpec((1, hpwp), lambda b, k: (0, 0)),
            ],
            out_specs=[
                pl.BlockSpec((1, cout_p, hpwp), lambda b, k: (b, 0, 0)),
                pl.BlockSpec((1, cout_p, 1), lambda b, k: (b, 0, 0)),
                pl.BlockSpec((1, cout_p, 1), lambda b, k: (b, 0, 0)),
            ],
            scratch_shapes=[pltpu.VMEM((cout_p, hpwp), jnp.float32),
                            pltpu.VMEM((tk, lbuf), jnp.bfloat16)],
        ),
        compiler_params=pltpu.CompilerParams(
            dimension_semantics=("parallel", "arbitrary"),
            vmem_limit_bytes=_vmem_limit(est)),
    )(y1_store, mean1_col, w_taps, mask_buf, mask_win)


def bn_relu(y2, scale_c, bias_c):
    n, c, hpwp = y2.shape
    s2 = scale_c.reshape(c, 1).astype(jnp.float32)
    b2 = bias_c.reshape(c, 1).astype(jnp.float32)
    return pl.pallas_call(
        _bn_relu_kernel,
        out_shape=jax.ShapeDtypeStruct((n, c, hpwp), jnp.float32),
        grid_spec=pltpu.PrefetchScalarGridSpec(
            num_scalar_prefetch=0,
            grid=(n,),
            in_specs=[
                pl.BlockSpec((1, c, hpwp), lambda b: (b, 0, 0)),
                pl.BlockSpec((c, 1), lambda b: (0, 0)),
                pl.BlockSpec((c, 1), lambda b: (0, 0)),
            ],
            out_specs=pl.BlockSpec((1, c, hpwp), lambda b: (b, 0, 0)),
        ),
        compiler_params=pltpu.CompilerParams(dimension_semantics=("parallel",)),
    )(y2, s2, b2)


# ----------------------------------------------------------------------------
# Plain-JAX glue (tiny data movement; XLA fuses it)
# ----------------------------------------------------------------------------
def _interp_matrix(src, dst):
    """(dst, src) bilinear interpolation matrix, align_corners=True."""
    if src == 1:
        return jnp.ones((dst, 1), jnp.float32)
    pos = jnp.arange(dst, dtype=jnp.float32) * (src - 1) / (dst - 1)
    lo = jnp.clip(jnp.floor(pos).astype(jnp.int32), 0, src - 2)
    hi = lo + 1
    w = pos - lo.astype(jnp.float32)
    cols = jnp.arange(src)[None, :]
    return ((cols == lo[:, None]).astype(jnp.float32) * (1.0 - w)[:, None]
            + (cols == hi[:, None]).astype(jnp.float32) * w[:, None])


def _to_buffer(x_nchw, base, lbuf):
    """(N, C, H, W) -> (N, C, Lbuf) zero-padded image in guard-buffer layout."""
    n, c, h, w = x_nchw.shape
    xp = jnp.pad(x_nchw, ((0, 0), (0, 0), (1, 1), (1, 1)))
    flat = xp.reshape(n, c, (h + 2) * (w + 2))
    return jnp.pad(flat, ((0, 0), (0, 0), (base, lbuf - base - (h + 2) * (w + 2))))


def _window_mask(H, W):
    """(1, Hp*Wp) 0/1 mask of real pixels inside the padded window."""
    wp = W + 2
    p = jnp.arange((H + 2) * wp)
    row, col = p // wp, p % wp
    m = ((row >= 1) & (row <= H) & (col >= 1) & (col <= W)).astype(jnp.float32)
    return m.reshape(1, -1)


def _buffer_mask(H, W, base, lbuf):
    """(1, Lbuf) 0/1 mask of real pixels inside the guard buffer."""
    wp = W + 2
    hpwp = (H + 2) * wp
    u = jnp.arange(lbuf)
    pos = u - base
    row, col = pos // wp, pos % wp
    m = ((pos >= 0) & (pos < hpwp) & (row >= 1) & (row <= H)
         & (col >= 1) & (col <= W)).astype(jnp.float32)
    return m.reshape(1, -1)


def _finalize_bn(s, q, count):
    """Reduce per-batch partial sums -> (mean, 1/sqrt(var+eps)), f32 math."""
    mean = jnp.sum(s, axis=(0, 2)) / count
    msq = jnp.sum(q, axis=(0, 2)) / count
    var = jnp.maximum(msq - mean * mean, 0.0)
    scale = 1.0 / jnp.sqrt(var + EPS)
    return mean, scale


@jax.jit
def up_forward(x1_nchw, x2_nchw, w1_oihw, w2_oihw):
    """Up(in_channels, out_channels, bilinear=True).forward(x1, x2)."""
    N, C2, H, W = x2_nchw.shape
    _, C1, _, _ = x1_nchw.shape
    Cmid, Cin_w = w1_oihw.shape[:2]
    Cout = w2_oihw.shape[0]
    Cin = C1 + C2
    assert Cin == Cin_w

    # 1) bilinear 2x upsample of x1 (align_corners=True) as two tiny matmuls
    Ry = _interp_matrix(x1_nchw.shape[2], 2 * x1_nchw.shape[2])
    Rx = _interp_matrix(x1_nchw.shape[3], 2 * x1_nchw.shape[3])
    x1u = jnp.einsum('nchw,oh,pw->ncop', x1_nchw.astype(jnp.float32), Ry, Rx)

    # 2) pad x1 to x2's spatial size, 3) channel concat (torch.cat([x2, x1]))
    dY = H - x1u.shape[2]
    dX = W - x1u.shape[3]
    x1p = jnp.pad(x1u, ((0, 0), (0, 0),
                        (dY // 2, dY - dY // 2), (dX // 2, dX - dX // 2)))
    x = jnp.concatenate([x2_nchw.astype(jnp.float32), x1p], axis=1)

    # channel padding (sublane-friendly) and guard-buffer geometry
    Cin_p = _round_up(Cin, 8)
    Cmid_p = _round_up(Cmid, 8)
    Cout_p = _round_up(Cout, 8)
    Hp, Wp = H + 2, W + 2
    HpWp = Hp * Wp
    base = _round_up(Wp + 1, 128)
    Lbuf = _round_up(base + HpWp + Wp + 1, 128)

    x = jnp.pad(x, ((0, 0), (0, Cin_p - Cin), (0, 0), (0, 0)))
    x_store = _to_buffer(x, base, Lbuf).astype(jnp.bfloat16)

    mask_win = _window_mask(H, W)
    mask_buf = _buffer_mask(H, W, base, Lbuf)

    # weights: OIHW -> (9 taps, Cout, Cin) bf16, zero-padded channels
    w1p = jnp.pad(w1_oihw, ((0, Cmid_p - Cmid), (0, Cin_p - Cin), (0, 0), (0, 0)))
    w1t = jnp.transpose(w1p, (2, 3, 0, 1)).reshape(9, Cmid_p, Cin_p).astype(jnp.bfloat16)

    count = jnp.float32(N * H * W)   # real pixels only (padding never counted)

    # 4) conv1 (in-kernel 3x3 taps, 9 MXU matmuls) + fused BN1 partial sums
    y1, s1, q1 = conv_bnstats(x_store, w1t, mask_win, H=H, W=W, base=base)
    mean1, scale1 = _finalize_bn(s1, q1, count)

    # 5) fold BN1 scale into conv2 weight columns (scale1 > 0 so ReLU commutes);
    #    conv2 kernel fuses the mean-centering + ReLU + pad-ring re-zeroing
    w2p = jnp.pad(w2_oihw, ((0, Cout_p - Cout), (0, Cmid_p - Cmid), (0, 0), (0, 0)))
    w2f = w2p * scale1[None, :, None, None]
    w2t = jnp.transpose(w2f, (2, 3, 0, 1)).reshape(9, Cout_p, Cmid_p).astype(jnp.bfloat16)

    y2, s2, q2 = bnrelu_conv_bnstats(y1, mean1.reshape(Cmid_p, 1), w2t,
                                     mask_buf, mask_win, H=H, W=W, base=base)
    mean2, scale2 = _finalize_bn(s2, q2, count)
    bias2 = -mean2 * scale2

    # 6) final BN2 + ReLU (lane-dense Pallas kernel), then slice off padding
    out = bn_relu(y2, scale2, bias2)                       # (N, Cout_p, HpWp) f32
    out = out.reshape(N, Cout_p, Hp, Wp)[:, :Cout, 1:1 + H, 1:1 + W]
    return out


# ----------------------------------------------------------------------------
# Pure-JAX reference (for an in-script sanity check)
# ----------------------------------------------------------------------------
def _ref_up_forward(x1, x2, w1, w2):
    Ry = _interp_matrix(x1.shape[2], 2 * x1.shape[2])
    Rx = _interp_matrix(x1.shape[3], 2 * x1.shape[3])
    x1u = jnp.einsum('nchw,oh,pw->ncop', x1, Ry, Rx)
    dY = x2.shape[2] - x1u.shape[2]
    dX = x2.shape[3] - x1u.shape[3]
    x1p = jnp.pad(x1u, ((0, 0), (0, 0),
                        (dY // 2, dY - dY // 2), (dX // 2, dX - dX // 2)))
    x = jnp.concatenate([x2, x1p], axis=1)

    def conv_bn_relu(z, w):
        y = jax.lax.conv_general_dilated(
            z, w, window_strides=(1, 1), padding=((1, 1), (1, 1)),
            dimension_numbers=('NCHW', 'OIHW', 'NCHW'))
        mean = jnp.mean(y, axis=(0, 2, 3), keepdims=True)
        var = jnp.var(y, axis=(0, 2, 3), keepdims=True)
        return jnp.maximum((y - mean) / jnp.sqrt(var + EPS), 0.0)

    return conv_bn_relu(conv_bn_relu(x, w1), w2)


# ----------------------------------------------------------------------------
# Main
# ----------------------------------------------------------------------------
if __name__ == "__main__":
    key = jax.random.PRNGKey(0)
    k_x1, k_x2, k_w1, k_w2 = jax.random.split(key, 4)

    # Up(in_channels=8, out_channels=4, bilinear=True): mid = in_channels // 2
    in_channels, out_channels = 8, 4
    mid_channels = in_channels // 2
    N = 2
    H2, W2 = 16, 16                 # x2 spatial size
    H1, W1 = 8, 8                   # x1 spatial size (gets upsampled 2x)
    C1 = in_channels // 2           # x1 channels
    C2 = in_channels - C1           # x2 channels (concat -> in_channels)

    x1 = jax.random.normal(k_x1, (N, C1, H1, W1), dtype=jnp.float32)
    x2 = jax.random.normal(k_x2, (N, C2, H2, W2), dtype=jnp.float32)
    w1 = jax.random.normal(k_w1, (mid_channels, in_channels, 3, 3),
                           dtype=jnp.float32) * 0.1
    w2 = jax.random.normal(k_w2, (out_channels, mid_channels, 3, 3),
                           dtype=jnp.float32) * 0.1

    out = jax.block_until_ready(up_forward(x1, x2, w1, w2))
    assert out.shape == (N, out_channels, H2, W2), out.shape
    assert bool(jnp.all(jnp.isfinite(out)))

    ref = _ref_up_forward(x1, x2, w1, w2)
    max_err = float(jnp.max(jnp.abs(out - ref)))
    mean_err = float(jnp.mean(jnp.abs(out - ref)))
    # bf16 MXU inputs + bf16 intermediates: allow bf16-level rounding.
    assert max_err < 1e-1, f"max abs err vs reference: {max_err}"
    assert mean_err < 2e-2, f"mean abs err vs reference: {mean_err}"
    print("KERNEL_OK")
</pallas_src>

<mosaic_0001>
module attributes {stable_mosaic.version = 11 : i64} {
  func.func @_conv_bnstats_kernel(%arg0: i32, %arg1: i32, %arg2: memref<1x8x512xbf16, #tpu.memory_space<vmem>>, %arg3: memref<9x8x8xbf16, #tpu.memory_space<vmem>>, %arg4: memref<1x324xf32, #tpu.memory_space<vmem>>, %arg5: memref<1x8x512xbf16, #tpu.memory_space<vmem>>, %arg6: memref<1x8x1xf32, #tpu.memory_space<vmem>>, %arg7: memref<1x8x1xf32, #tpu.memory_space<vmem>>, %arg8: memref<8x324xf32, #tpu.memory_space<vmem>>) attributes {dimension_semantics = [#tpu.dimension_semantics<parallel>, #tpu.dimension_semantics<arbitrary>], iteration_bounds = array<i64: 2, 1>, scalar_prefetch = 0 : i64, scratch_operands = 1 : i64, tpu.core_type = #tpu.core_type<tc>, window_params = [{transform_indices = @transform_0, window_bounds = array<i64: 1, 8, 512>}, {transform_indices = @transform_1, window_bounds = array<i64: 9, 8, 8>}, {pipeline_mode = #tpu.pipeline_mode<synchronous>, transform_indices = @transform_2, window_bounds = array<i64: 1, 324>}, {transform_indices = @transform_3, window_bounds = array<i64: 1, 8, 512>}, {transform_indices = @transform_4, window_bounds = array<i64: 1, 8, 1>}, {transform_indices = @transform_5, window_bounds = array<i64: 1, 8, 1>}]} {
    %c0_i32 = arith.constant 0 : i32
    %0 = arith.cmpi eq, %arg1, %c0_i32 : i32
    %1 = arith.extui %0 : i1 to i32
    %c0_i32_0 = arith.constant 0 : i32
    %2 = arith.cmpi ne, %1, %c0_i32_0 : i32
    scf.if %2 {
      %cst_51 = arith.constant 0.000000e+00 : f32
      %62 = vector.broadcast %cst_51 : f32 to vector<8x324xf32>
      %c0_52 = arith.constant 0 : index
      %c0_53 = arith.constant 0 : index
      %63 = vector.load %arg8[%c0_52, %c0_53] : memref<8x324xf32, #tpu.memory_space<vmem>>, vector<8x324xf32>
      tpu.vector_store %arg8[%c0_52, %c0_53], %62 {strides = array<i32>} : memref<8x324xf32, #tpu.memory_space<vmem>>, vector<8x324xf32>,
    } else {
    }
    %c0 = arith.constant 0 : index
    %c0_1 = arith.constant 0 : index
    %3 = vector.load %arg8[%c0, %c0_1] : memref<8x324xf32, #tpu.memory_space<vmem>>, vector<8x324xf32>
    %c0_2 = arith.constant 0 : index
    %c0_3 = arith.constant 0 : index
    %c109 = arith.constant 109 : index
    %4 = vector.load %arg2[%c0_2, %c0_3, %c109] : memref<1x8x512xbf16, #tpu.memory_space<vmem>>, vector<1x8x324xbf16>
    %5 = vector.shape_cast %4 : vector<1x8x324xbf16> to vector<8x324xbf16>
    %c0_4 = arith.constant 0 : index
    %c0_5 = arith.constant 0 : index
    %c0_6 = arith.constant 0 : index
    %6 = vector.load %arg3[%c0_4, %c0_5, %c0_6] : memref<9x8x8xbf16, #tpu.memory_space<vmem>>, vector<1x8x8xbf16>
    %7 = vector.shape_cast %6 : vector<1x8x8xbf16> to vector<8x8xbf16>
    %cst = arith.constant dense<0.000000e+00> : vector<8x324xf32>
    %8 = tpu.matmul %7, %5, %cst {dimension_numbers = #tpu.dot_dimension_numbers<[1], [0], [0], [1], [0, 0, 1, 1], [], []>} : vector<8x8xbf16>, vector<8x324xbf16>, vector<8x324xf32> -> vector<8x324xf32>
    %9 = arith.addf %3, %8 : vector<8x324xf32>
    %c0_7 = arith.constant 0 : index
    %c0_8 = arith.constant 0 : index
    %c110 = arith.constant 110 : index
    %10 = vector.load %arg2[%c0_7, %c0_8, %c110] : memref<1x8x512xbf16, #tpu.memory_space<vmem>>, vector<1x8x324xbf16>
    %11 = vector.shape_cast %10 : vector<1x8x324xbf16> to vector<8x324xbf16>
    %c1 = arith.constant 1 : index
    %c0_9 = arith.constant 0 : index
    %c0_10 = arith.constant 0 : index
    %12 = vector.load %arg3[%c1, %c0_9, %c0_10] : memref<9x8x8xbf16, #tpu.memory_space<vmem>>, vector<1x8x8xbf16>
    %13 = vector.shape_cast %12 : vector<1x8x8xbf16> to vector<8x8xbf16>
    %cst_11 = arith.constant dense<0.000000e+00> : vector<8x324xf32>
    %14 = tpu.matmul %13, %11, %cst_11 {dimension_numbers = #tpu.dot_dimension_numbers<[1], [0], [0], [1], [0, 0, 1, 1], [], []>} : vector<8x8xbf16>, vector<8x324xbf16>, vector<8x324xf32> -> vector<8x324xf32>
    %15 = arith.addf %9, %14 : vector<8x324xf32>
    %c0_12 = arith.constant 0 : index
    %c0_13 = arith.constant 0 : index
    %c111 = arith.constant 111 : index
    %16 = vector.load %arg2[%c0_12, %c0_13, %c111] : memref<1x8x512xbf16, #tpu.memory_space<vmem>>, vector<1x8x324xbf16>
    %17 = vector.shape_cast %16 : vector<1x8x324xbf16> to vector<8x324xbf16>
    %c2 = arith.constant 2 : index
    %c0_14 = arith.constant 0 : index
    %c0_15 = arith.constant 0 : index
    %18 = vector.load %arg3[%c2, %c0_14, %c0_15] : memref<9x8x8xbf16, #tpu.memory_space<vmem>>, vector<1x8x8xbf16>
    %19 = vector.shape_cast %18 : vector<1x8x8xbf16> to vector<8x8xbf16>
    %cst_16 = arith.constant dense<0.000000e+00> : vector<8x324xf32>
    %20 = tpu.matmul %19, %17, %cst_16 {dimension_numbers = #tpu.dot_dimension_numbers<[1], [0], [0], [1], [0, 0, 1, 1], [], []>} : vector<8x8xbf16>, vector<8x324xbf16>, vector<8x324xf32> -> vector<8x324xf32>
    %21 = arith.addf %15, %20 : vector<8x324xf32>
    %c0_17 = arith.constant 0 : index
    %c0_18 = arith.constant 0 : index
    %c127 = arith.constant 127 : index
    %22 = vector.load %arg2[%c0_17, %c0_18, %c127] : memref<1x8x512xbf16, #tpu.memory_space<vmem>>, vector<1x8x324xbf16>
    %23 = vector.shape_cast %22 : vector<1x8x324xbf16> to vector<8x324xbf16>
    %c3 = arith.constant 3 : index
    %c0_19 = arith.constant 0 : index
    %c0_20 = arith.constant 0 : index
    %24 = vector.load %arg3[%c3, %c0_19, %c0_20] : memref<9x8x8xbf16, #tpu.memory_space<vmem>>, vector<1x8x8xbf16>
    %25 = vector.shape_cast %24 : vector<1x8x8xbf16> to vector<8x8xbf16>
    %cst_21 = arith.constant dense<0.000000e+00> : vector<8x324xf32>
    %26 = tpu.matmul %25, %23, %cst_21 {dimension_numbers = #tpu.dot_dimension_numbers<[1], [0], [0], [1], [0, 0, 1, 1], [], []>} : vector<8x8xbf16>, vector<8x324xbf16>, vector<8x324xf32> -> vector<8x324xf32>
    %27 = arith.addf %21, %26 : vector<8x324xf32>
    %c0_22 = arith.constant 0 : index
    %c0_23 = arith.constant 0 : index
    %c128 = arith.constant 128 : index
    %28 = vector.load %arg2[%c0_22, %c0_23, %c128] : memref<1x8x512xbf16, #tpu.memory_space<vmem>>, vector<1x8x324xbf16>
    %29 = vector.shape_cast %28 : vector<1x8x324xbf16> to vector<8x324xbf16>
    %c4 = arith.constant 4 : index
    %c0_24 = arith.constant 0 : index
    %c0_25 = arith.constant 0 : index
    %30 = vector.load %arg3[%c4, %c0_24, %c0_25] : memref<9x8x8xbf16, #tpu.memory_space<vmem>>, vector<1x8x8xbf16>
    %31 = vector.shape_cast %30 : vector<1x8x8xbf16> to vector<8x8xbf16>
    %cst_26 = arith.constant dense<0.000000e+00> : vector<8x324xf32>
    %32 = tpu.matmul %31, %29, %cst_26 {dimension_numbers = #tpu.dot_dimension_numbers<[1], [0], [0], [1], [0, 0, 1, 1], [], []>} : vector<8x8xbf16>, vector<8x324xbf16>, vector<8x324xf32> -> vector<8x324xf32>
    %33 = arith.addf %27, %32 : vector<8x324xf32>
    %c0_27 = arith.constant 0 : index
    %c0_28 = arith.constant 0 : index
    %c129 = arith.constant 129 : index
    %34 = vector.load %arg2[%c0_27, %c0_28, %c129] : memref<1x8x512xbf16, #tpu.memory_space<vmem>>, vector<1x8x324xbf16>
    %35 = vector.shape_cast %34 : vector<1x8x324xbf16> to vector<8x324xbf16>
    %c5 = arith.constant 5 : index
    %c0_29 = arith.constant 0 : index
    %c0_30 = arith.constant 0 : index
    %36 = vector.load %arg3[%c5, %c0_29, %c0_30] : memref<9x8x8xbf16, #tpu.memory_space<vmem>>, vector<1x8x8xbf16>
    %37 = vector.shape_cast %36 : vector<1x8x8xbf16> to vector<8x8xbf16>
    %cst_31 = arith.constant dense<0.000000e+00> : vector<8x324xf32>
    %38 = tpu.matmul %37, %35, %cst_31 {dimension_numbers = #tpu.dot_dimension_numbers<[1], [0], [0], [1], [0, 0, 1, 1], [], []>} : vector<8x8xbf16>, vector<8x324xbf16>, vector<8x324xf32> -> vector<8x324xf32>
    %39 = arith.addf %33, %38 : vector<8x324xf32>
    %c0_32 = arith.constant 0 : index
    %c0_33 = arith.constant 0 : index
    %c145 = arith.constant 145 : index
    %40 = vector.load %arg2[%c0_32, %c0_33, %c145] : memref<1x8x512xbf16, #tpu.memory_space<vmem>>, vector<1x8x324xbf16>
    %41 = vector.shape_cast %40 : vector<1x8x324xbf16> to vector<8x324xbf16>
    %c6 = arith.constant 6 : index
    %c0_34 = arith.constant 0 : index
    %c0_35 = arith.constant 0 : index
    %42 = vector.load %arg3[%c6, %c0_34, %c0_35] : memref<9x8x8xbf16, #tpu.memory_space<vmem>>, vector<1x8x8xbf16>
    %43 = vector.shape_cast %42 : vector<1x8x8xbf16> to vector<8x8xbf16>
    %cst_36 = arith.constant dense<0.000000e+00> : vector<8x324xf32>
    %44 = tpu.matmul %43, %41, %cst_36 {dimension_numbers = #tpu.dot_dimension_numbers<[1], [0], [0], [1], [0, 0, 1, 1], [], []>} : vector<8x8xbf16>, vector<8x324xbf16>, vector<8x324xf32> -> vector<8x324xf32>
    %45 = arith.addf %39, %44 : vector<8x324xf32>
    %c0_37 = arith.constant 0 : index
    %c0_38 = arith.constant 0 : index
    %c146 = arith.constant 146 : index
    %46 = vector.load %arg2[%c0_37, %c0_38, %c146] : memref<1x8x512xbf16, #tpu.memory_space<vmem>>, vector<1x8x324xbf16>
    %47 = vector.shape_cast %46 : vector<1x8x324xbf16> to vector<8x324xbf16>
    %c7 = arith.constant 7 : index
    %c0_39 = arith.constant 0 : index
    %c0_40 = arith.constant 0 : index
    %48 = vector.load %arg3[%c7, %c0_39, %c0_40] : memref<9x8x8xbf16, #tpu.memory_space<vmem>>, vector<1x8x8xbf16>
    %49 = vector.shape_cast %48 : vector<1x8x8xbf16> to vector<8x8xbf16>
    %cst_41 = arith.constant dense<0.000000e+00> : vector<8x324xf32>
    %50 = tpu.matmul %49, %47, %cst_41 {dimension_numbers = #tpu.dot_dimension_numbers<[1], [0], [0], [1], [0, 0, 1, 1], [], []>} : vector<8x8xbf16>, vector<8x324xbf16>, vector<8x324xf32> -> vector<8x324xf32>
    %51 = arith.addf %45, %50 : vector<8x324xf32>
    %c0_42 = arith.constant 0 : index
    %c0_43 = arith.constant 0 : index
    %c147 = arith.constant 147 : index
    %52 = vector.load %arg2[%c0_42, %c0_43, %c147] : memref<1x8x512xbf16, #tpu.memory_space<vmem>>, vector<1x8x324xbf16>
    %53 = vector.shape_cast %52 : vector<1x8x324xbf16> to vector<8x324xbf16>
    %c8 = arith.constant 8 : index
    %c0_44 = arith.constant 0 : index
    %c0_45 = arith.constant 0 : index
    %54 = vector.load %arg3[%c8, %c0_44, %c0_45] : memref<9x8x8xbf16, #tpu.memory_space<vmem>>, vector<1x8x8xbf16>
    %55 = vector.shape_cast %54 : vector<1x8x8xbf16> to vector<8x8xbf16>
    %cst_46 = arith.constant dense<0.000000e+00> : vector<8x324xf32>
    %56 = tpu.matmul %55, %53, %cst_46 {dimension_numbers = #tpu.dot_dimension_numbers<[1], [0], [0], [1], [0, 0, 1, 1], [], []>} : vector<8x8xbf16>, vector<8x324xbf16>, vector<8x324xf32> -> vector<8x324xf32>
    %57 = arith.addf %51, %56 : vector<8x324xf32>
    %c0_47 = arith.constant 0 : index
    %c0_48 = arith.constant 0 : index
    %58 = vector.load %arg8[%c0_47, %c0_48] : memref<8x324xf32, #tpu.memory_space<vmem>>, vector<8x324xf32>
    tpu.vector_store %arg8[%c0_47, %c0_48], %57 {strides = array<i32>} : memref<8x324xf32, #tpu.memory_space<vmem>>, vector<8x324xf32>,
    %c0_i32_49 = arith.constant 0 : i32
    %59 = arith.cmpi eq, %arg1, %c0_i32_49 : i32
    %60 = arith.extui %59 : i1 to i32
    %c0_i32_50 = arith.constant 0 : i32
    %61 = arith.cmpi ne, %60, %c0_i32_50 : i32
    scf.if %61 {
      %c0_51 = arith.constant 0 : index
      %c0_52 = arith.constant 0 : index
      %62 = vector.load %arg8[%c0_51, %c0_52] : memref<8x324xf32, #tpu.memory_space<vmem>>, vector<8x324xf32>
      %c0_53 = arith.constant 0 : index
      %c0_54 = arith.constant 0 : index
      %63 = vector.load %arg4[%c0_53, %c0_54] : memref<1x324xf32, #tpu.memory_space<vmem>>, vector<1x324xf32>
      %64 = vector.broadcast %63 : vector<1x324xf32> to vector<8x324xf32>
      %65 = arith.mulf %62, %64 : vector<8x324xf32>
      %cst_55 = arith.constant dense<0.000000e+00> : vector<8xf32>
      %66 = vector.multi_reduction <add>, %65, %cst_55 [1] : vector<8x324xf32> to vector<8xf32>
      %67 = vector.shape_cast %66 : vector<8xf32> to vector<8x1xf32>
      %68 = vector.shape_cast %67 : vector<8x1xf32> to vector<1x8x1xf32>
      %c0_56 = arith.constant 0 : index
      %c0_57 = arith.constant 0 : index
      %c0_58 = arith.constant 0 : index
      %69 = vector.load %arg6[%c0_56, %c0_57, %c0_58] : memref<1x8x1xf32, #tpu.memory_space<vmem>>, vector<1x8x1xf32>
      tpu.vector_store %arg6[%c0_56, %c0_57, %c0_58], %68 {strides = array<i32>} : memref<1x8x1xf32, #tpu.memory_space<vmem>>, vector<1x8x1xf32>,
      %70 = arith.mulf %65, %62 : vector<8x324xf32>
      %cst_59 = arith.constant dense<0.000000e+00> : vector<8xf32>
      %71 = vector.multi_reduction <add>, %70, %cst_59 [1] : vector<8x324xf32> to vector<8xf32>
      %72 = vector.shape_cast %71 : vector<8xf32> to vector<8x1xf32>
      %73 = vector.shape_cast %72 : vector<8x1xf32> to vector<1x8x1xf32>
      %c0_60 = arith.constant 0 : index
      %c0_61 = arith.constant 0 : index
      %c0_62 = arith.constant 0 : index
      %74 = vector.load %arg7[%c0_60, %c0_61, %c0_62] : memref<1x8x1xf32, #tpu.memory_space<vmem>>, vector<1x8x1xf32>
      tpu.vector_store %arg7[%c0_60, %c0_61, %c0_62], %73 {strides = array<i32>} : memref<1x8x1xf32, #tpu.memory_space<vmem>>, vector<1x8x1xf32>,
      %cst_63 = arith.constant 0.000000e+00 : bf16
      %75 = vector.broadcast %cst_63 : bf16 to vector<1x8x512xbf16>
      %c0_64 = arith.constant 0 : index
      %c0_65 = arith.constant 0 : index
      %c0_66 = arith.constant 0 : index
      %76 = vector.load %arg5[%c0_64, %c0_65, %c0_66] : memref<1x8x512xbf16, #tpu.memory_space<vmem>>, vector<1x8x512xbf16>
      tpu.vector_store %arg5[%c0_64, %c0_65, %c0_66], %75 {strides = array<i32>} : memref<1x8x512xbf16, #tpu.memory_space<vmem>>, vector<1x8x512xbf16>,
      %77 = arith.truncf %62 : vector<8x324xf32> to vector<8x324xbf16>
      %c0_67 = arith.constant 0 : index
      %c0_68 = arith.constant 0 : index
      %c128_69 = arith.constant 128 : index
      %78 = vector.load %arg5[%c0_67, %c0_68, %c128_69] : memref<1x8x512xbf16, #tpu.memory_space<vmem>>, vector<1x8x324xbf16>
      %79 = vector.shape_cast %78 : vector<1x8x324xbf16> to vector<8x324xbf16>
      %80 = vector.shape_cast %77 : vector<8x324xbf16> to vector<1x8x324xbf16>
      tpu.vector_store %arg5[%c0_67, %c0_68, %c128_69], %80 {strides = array<i32>} : memref<1x8x512xbf16, #tpu.memory_space<vmem>>, vector<1x8x324xbf16>,
    } else {
    }
    return
  }
  func.func @transform_0(%arg0: i32, %arg1: i32) -> (i32, i32, i32) {
    %c0_i32 = arith.constant 0 : i32
    %c0_i32_0 = arith.constant 0 : i32
    return %arg0, %arg1, %c0_i32 : i32, i32, i32
  }
  func.func @transform_1(%arg0: i32, %arg1: i32) -> (i32, i32, i32) {
    %c0_i32 = arith.constant 0 : i32
    %c0_i32_0 = arith.constant 0 : i32
    %c0_i32_1 = arith.constant 0 : i32
    return %c0_i32, %c0_i32_0, %arg1 : i32, i32, i32
  }
  func.func @transform_2(%arg0: i32, %arg1: i32) -> (i32, i32) {
    %c0_i32 = arith.constant 0 : i32
    %c0_i32_0 = arith.constant 0 : i32
    %c0_i32_1 = arith.constant 0 : i32
    return %c0_i32, %c0_i32_0 : i32, i32
  }
  func.func @transform_3(%arg0: i32, %arg1: i32) -> (i32, i32, i32) {
    %c0_i32 = arith.constant 0 : i32
    %c0_i32_0 = arith.constant 0 : i32
    %c0_i32_1 = arith.constant 0 : i32
    return %arg0, %c0_i32, %c0_i32_0 : i32, i32, i32
  }
  func.func @transform_4(%arg0: i32, %arg1: i32) -> (i32, i32, i32) {
    %c0_i32 = arith.constant 0 : i32
    %c0_i32_0 = arith.constant 0 : i32
    %c0_i32_1 = arith.constant 0 : i32
    return %arg0, %c0_i32, %c0_i32_0 : i32, i32, i32
  }
  func.func @transform_5(%arg0: i32, %arg1: i32) -> (i32, i32, i32) {
    %c0_i32 = arith.constant 0 : i32
    %c0_i32_0 = arith.constant 0 : i32
    %c0_i32_1 = arith.constant 0 : i32
    return %arg0, %c0_i32, %c0_i32_0 : i32, i32, i32
  }
}

module attributes {stable_mosaic.version = 11 : i64} {
  func.func @_bn_relu_kernel(%arg0: i32, %arg1: memref<1x8x324xbf16, #tpu.memory_space<vmem>>, %arg2: memref<8x1xf32, #tpu.memory_space<vmem>>, %arg3: memref<8x1xf32, #tpu.memory_space<vmem>>, %arg4: memref<1x8x324xf32, #tpu.memory_space<vmem>>) attributes {dimension_semantics = [#tpu.dimension_semantics<parallel>], iteration_bounds = array<i64: 2>, scalar_prefetch = 0 : i64, scratch_operands = 0 : i64, tpu.core_type = #tpu.core_type<tc>, window_params = [{transform_indices = @transform_0, window_bounds = array<i64: 1, 8, 324>}, {pipeline_mode = #tpu.pipeline_mode<synchronous>, transform_indices = @transform_1, window_bounds = array<i64: 8, 1>}, {pipeline_mode = #tpu.pipeline_mode<synchronous>, transform_indices = @transform_2, window_bounds = array<i64: 8, 1>}, {transform_indices = @transform_3, window_bounds = array<i64: 1, 8, 324>}]} {
    %c0 = arith.constant 0 : index
    %c0_0 = arith.constant 0 : index
    %c0_1 = arith.constant 0 : index
    %0 = vector.load %arg1[%c0, %c0_0, %c0_1] : memref<1x8x324xbf16, #tpu.memory_space<vmem>>, vector<1x8x324xbf16>
    %1 = vector.shape_cast %0 : vector<1x8x324xbf16> to vector<8x324xbf16>
    %2 = arith.extf %1 : vector<8x324xbf16> to vector<8x324xf32>
    %c0_2 = arith.constant 0 : index
    %c0_3 = arith.constant 0 : index
    %3 = vector.load %arg2[%c0_2, %c0_3] : memref<8x1xf32, #tpu.memory_space<vmem>>, vector<8x1xf32>
    %4 = vector.broadcast %3 : vector<8x1xf32> to vector<8x324xf32>
    %5 = arith.mulf %2, %4 : vector<8x324xf32>
    %c0_4 = arith.constant 0 : index
    %c0_5 = arith.constant 0 : index
    %6 = vector.load %arg3[%c0_4, %c0_5] : memref<8x1xf32, #tpu.memory_space<vmem>>, vector<8x1xf32>
    %7 = vector.broadcast %6 : vector<8x1xf32> to vector<8x324xf32>
    %8 = arith.addf %5, %7 : vector<8x324xf32>
    %cst = arith.constant 0.000000e+00 : f32
    %9 = vector.broadcast %cst : f32 to vector<8x324xf32>
    %10 = arith.maximumf %8, %9 : vector<8x324xf32>
    %c0_6 = arith.constant 0 : index
    %c0_7 = arith.constant 0 : index
    %c0_8 = arith.constant 0 : index
    %11 = vector.load %arg4[%c0_6, %c0_7, %c0_8] : memref<1x8x324xf32, #tpu.memory_space<vmem>>, vector<1x8x324xf32>
    %12 = vector.shape_cast %11 : vector<1x8x324xf32> to vector<8x324xf32>
    %13 = vector.shape_cast %10 : vector<8x324xf32> to vector<1x8x324xf32>
    tpu.vector_store %arg4[%c0_6, %c0_7, %c0_8], %13 {strides = array<i32>} : memref<1x8x324xf32, #tpu.memory_space<vmem>>, vector<1x8x324xf32>,
    return
  }
  func.func @transform_0(%arg0: i32) -> (i32, i32, i32) {
    %c0_i32 = arith.constant 0 : i32
    %c0_i32_0 = arith.constant 0 : i32
    %c0_i32_1 = arith.constant 0 : i32
    return %arg0, %c0_i32, %c0_i32_0 : i32, i32, i32
  }
  func.func @transform_1(%arg0: i32) -> (i32, i32) {
    %c0_i32 = arith.constant 0 : i32
    %c0_i32_0 = arith.constant 0 : i32
    %c0_i32_1 = arith.constant 0 : i32
    return %c0_i32, %c0_i32_0 : i32, i32
  }
  func.func @transform_2(%arg0: i32) -> (i32, i32) {
    %c0_i32 = arith.constant 0 : i32
    %c0_i32_0 = arith.constant 0 : i32
    %c0_i32_1 = arith.constant 0 : i32
    return %c0_i32, %c0_i32_0 : i32, i32
  }
  func.func @transform_3(%arg0: i32) -> (i32, i32, i32) {
    %c0_i32 = arith.constant 0 : i32
    %c0_i32_0 = arith.constant 0 : i32
    %c0_i32_1 = arith.constant 0 : i32
    return %arg0, %c0_i32, %c0_i32_0 : i32, i32, i32
  }
}

module attributes {stable_mosaic.version = 11 : i64} {
  func.func @_bnrelu_conv_bnstats_kernel(%arg0: i32, %arg1: i32, %arg2: memref<1x8x512xbf16, #tpu.memory_space<vmem>>, %arg3: memref<8x1xf32, #tpu.memory_space<vmem>>, %arg4: memref<9x8x8xbf16, #tpu.memory_space<vmem>>, %arg5: memref<1x512xf32, #tpu.memory_space<vmem>>, %arg6: memref<1x324xf32, #tpu.memory_space<vmem>>, %arg7: memref<1x8x324xbf16, #tpu.memory_space<vmem>>, %arg8: memref<1x8x1xf32, #tpu.memory_space<vmem>>, %arg9: memref<1x8x1xf32, #tpu.memory_space<vmem>>, %arg10: memref<8x324xf32, #tpu.memory_space<vmem>>, %arg11: memref<8x512xbf16, #tpu.memory_space<vmem>>) attributes {dimension_semantics = [#tpu.dimension_semantics<parallel>, #tpu.dimension_semantics<arbitrary>], iteration_bounds = array<i64: 2, 1>, scalar_prefetch = 0 : i64, scratch_operands = 2 : i64, tpu.core_type = #tpu.core_type<tc>, window_params = [{transform_indices = @transform_0, window_bounds = array<i64: 1, 8, 512>}, {transform_indices = @transform_1, window_bounds = array<i64: 8, 1>}, {transform_indices = @transform_2, window_bounds = array<i64: 9, 8, 8>}, {pipeline_mode = #tpu.pipeline_mode<synchronous>, transform_indices = @transform_3, window_bounds = array<i64: 1, 512>}, {pipeline_mode = #tpu.pipeline_mode<synchronous>, transform_indices = @transform_4, window_bounds = array<i64: 1, 324>}, {transform_indices = @transform_5, window_bounds = array<i64: 1, 8, 324>}, {transform_indices = @transform_6, window_bounds = array<i64: 1, 8, 1>}, {transform_indices = @transform_7, window_bounds = array<i64: 1, 8, 1>}]} {
    %c0_i32 = arith.constant 0 : i32
    %0 = arith.cmpi eq, %arg1, %c0_i32 : i32
    %1 = arith.extui %0 : i1 to i32
    %c0_i32_0 = arith.constant 0 : i32
    %2 = arith.cmpi ne, %1, %c0_i32_0 : i32
    scf.if %2 {
      %cst_52 = arith.constant 0.000000e+00 : f32
      %66 = vector.broadcast %cst_52 : f32 to vector<8x324xf32>
      %c0_53 = arith.constant 0 : index
      %c0_54 = arith.constant 0 : index
      %67 = vector.load %arg10[%c0_53, %c0_54] : memref<8x324xf32, #tpu.memory_space<vmem>>, vector<8x324xf32>
      tpu.vector_store %arg10[%c0_53, %c0_54], %66 {strides = array<i32>} : memref<8x324xf32, #tpu.memory_space<vmem>>, vector<8x324xf32>,
    } else {
    }
    %c0 = arith.constant 0 : index
    %c0_1 = arith.constant 0 : index
    %c0_2 = arith.constant 0 : index
    %3 = vector.load %arg2[%c0, %c0_1, %c0_2] : memref<1x8x512xbf16, #tpu.memory_space<vmem>>, vector<1x8x512xbf16>
    %4 = vector.shape_cast %3 : vector<1x8x512xbf16> to vector<8x512xbf16>
    %5 = arith.extf %4 : vector<8x512xbf16> to vector<8x512xf32>
    %c0_3 = arith.constant 0 : index
    %c0_4 = arith.constant 0 : index
    %6 = vector.load %arg3[%c0_3, %c0_4] : memref<8x1xf32, #tpu.memory_space<vmem>>, vector<8x1xf32>
    %7 = vector.broadcast %6 : vector<8x1xf32> to vector<8x512xf32>
    %8 = arith.subf %5, %7 : vector<8x512xf32>
    %cst = arith.constant 0.000000e+00 : f32
    %9 = vector.broadcast %cst : f32 to vector<8x512xf32>
    %10 = arith.maximumf %8, %9 : vector<8x512xf32>
    %c0_5 = arith.constant 0 : index
    %c0_6 = arith.constant 0 : index
    %11 = vector.load %arg5[%c0_5, %c0_6] : memref<1x512xf32, #tpu.memory_space<vmem>>, vector<1x512xf32>
    %12 = vector.broadcast %11 : vector<1x512xf32> to vector<8x512xf32>
    %13 = arith.mulf %10, %12 : vector<8x512xf32>
    %14 = arith.truncf %13 : vector<8x512xf32> to vector<8x512xbf16>
    %c0_7 = arith.constant 0 : index
    %c0_8 = arith.constant 0 : index
    %15 = vector.load %arg11[%c0_7, %c0_8] : memref<8x512xbf16, #tpu.memory_space<vmem>>, vector<8x512xbf16>
    tpu.vector_store %arg11[%c0_7, %c0_8], %14 {strides = array<i32>} : memref<8x512xbf16, #tpu.memory_space<vmem>>, vector<8x512xbf16>,
    %c0_9 = arith.constant 0 : index
    %c0_10 = arith.constant 0 : index
    %16 = vector.load %arg10[%c0_9, %c0_10] : memref<8x324xf32, #tpu.memory_space<vmem>>, vector<8x324xf32>
    %c0_11 = arith.constant 0 : index
    %c109 = arith.constant 109 : index
    %17 = vector.load %arg11[%c0_11, %c109] : memref<8x512xbf16, #tpu.memory_space<vmem>>, vector<8x324xbf16>
    %c0_12 = arith.constant 0 : index
    %c0_13 = arith.constant 0 : index
    %c0_14 = arith.constant 0 : index
    %18 = vector.load %arg4[%c0_12, %c0_13, %c0_14] : memref<9x8x8xbf16, #tpu.memory_space<vmem>>, vector<1x8x8xbf16>
    %19 = vector.shape_cast %18 : vector<1x8x8xbf16> to vector<8x8xbf16>
    %cst_15 = arith.constant dense<0.000000e+00> : vector<8x324xf32>
    %20 = tpu.matmul %19, %17, %cst_15 {dimension_numbers = #tpu.dot_dimension_numbers<[1], [0], [0], [1], [0, 0, 1, 1], [], []>} : vector<8x8xbf16>, vector<8x324xbf16>, vector<8x324xf32> -> vector<8x324xf32>
    %21 = arith.addf %16, %20 : vector<8x324xf32>
    %c0_16 = arith.constant 0 : index
    %c110 = arith.constant 110 : index
    %22 = vector.load %arg11[%c0_16, %c110] : memref<8x512xbf16, #tpu.memory_space<vmem>>, vector<8x324xbf16>
    %c1 = arith.constant 1 : index
    %c0_17 = arith.constant 0 : index
    %c0_18 = arith.constant 0 : index
    %23 = vector.load %arg4[%c1, %c0_17, %c0_18] : memref<9x8x8xbf16, #tpu.memory_space<vmem>>, vector<1x8x8xbf16>
    %24 = vector.shape_cast %23 : vector<1x8x8xbf16> to vector<8x8xbf16>
    %cst_19 = arith.constant dense<0.000000e+00> : vector<8x324xf32>
    %25 = tpu.matmul %24, %22, %cst_19 {dimension_numbers = #tpu.dot_dimension_numbers<[1], [0], [0], [1], [0, 0, 1, 1], [], []>} : vector<8x8xbf16>, vector<8x324xbf16>, vector<8x324xf32> -> vector<8x324xf32>
    %26 = arith.addf %21, %25 : vector<8x324xf32>
    %c0_20 = arith.constant 0 : index
    %c111 = arith.constant 111 : index
    %27 = vector.load %arg11[%c0_20, %c111] : memref<8x512xbf16, #tpu.memory_space<vmem>>, vector<8x324xbf16>
    %c2 = arith.constant 2 : index
    %c0_21 = arith.constant 0 : index
    %c0_22 = arith.constant 0 : index
    %28 = vector.load %arg4[%c2, %c0_21, %c0_22] : memref<9x8x8xbf16, #tpu.memory_space<vmem>>, vector<1x8x8xbf16>
    %29 = vector.shape_cast %28 : vector<1x8x8xbf16> to vector<8x8xbf16>
    %cst_23 = arith.constant dense<0.000000e+00> : vector<8x324xf32>
    %30 = tpu.matmul %29, %27, %cst_23 {dimension_numbers = #tpu.dot_dimension_numbers<[1], [0], [0], [1], [0, 0, 1, 1], [], []>} : vector<8x8xbf16>, vector<8x324xbf16>, vector<8x324xf32> -> vector<8x324xf32>
    %31 = arith.addf %26, %30 : vector<8x324xf32>
    %c0_24 = arith.constant 0 : index
    %c127 = arith.constant 127 : index
    %32 = vector.load %arg11[%c0_24, %c127] : memref<8x512xbf16, #tpu.memory_space<vmem>>, vector<8x324xbf16>
    %c3 = arith.constant 3 : index
    %c0_25 = arith.constant 0 : index
    %c0_26 = arith.constant 0 : index
    %33 = vector.load %arg4[%c3, %c0_25, %c0_26] : memref<9x8x8xbf16, #tpu.memory_space<vmem>>, vector<1x8x8xbf16>
    %34 = vector.shape_cast %33 : vector<1x8x8xbf16> to vector<8x8xbf16>
    %cst_27 = arith.constant dense<0.000000e+00> : vector<8x324xf32>
    %35 = tpu.matmul %34, %32, %cst_27 {dimension_numbers = #tpu.dot_dimension_numbers<[1], [0], [0], [1], [0, 0, 1, 1], [], []>} : vector<8x8xbf16>, vector<8x324xbf16>, vector<8x324xf32> -> vector<8x324xf32>
    %36 = arith.addf %31, %35 : vector<8x324xf32>
    %c0_28 = arith.constant 0 : index
    %c128 = arith.constant 128 : index
    %37 = vector.load %arg11[%c0_28, %c128] : memref<8x512xbf16, #tpu.memory_space<vmem>>, vector<8x324xbf16>
    %c4 = arith.constant 4 : index
    %c0_29 = arith.constant 0 : index
    %c0_30 = arith.constant 0 : index
    %38 = vector.load %arg4[%c4, %c0_29, %c0_30] : memref<9x8x8xbf16, #tpu.memory_space<vmem>>, vector<1x8x8xbf16>
    %39 = vector.shape_cast %38 : vector<1x8x8xbf16> to vector<8x8xbf16>
    %cst_31 = arith.constant dense<0.000000e+00> : vector<8x324xf32>
    %40 = tpu.matmul %39, %37, %cst_31 {dimension_numbers = #tpu.dot_dimension_numbers<[1], [0], [0], [1], [0, 0, 1, 1], [], []>} : vector<8x8xbf16>, vector<8x324xbf16>, vector<8x324xf32> -> vector<8x324xf32>
    %41 = arith.addf %36, %40 : vector<8x324xf32>
    %c0_32 = arith.constant 0 : index
    %c129 = arith.constant 129 : index
    %42 = vector.load %arg11[%c0_32, %c129] : memref<8x512xbf16, #tpu.memory_space<vmem>>, vector<8x324xbf16>
    %c5 = arith.constant 5 : index
    %c0_33 = arith.constant 0 : index
    %c0_34 = arith.constant 0 : index
    %43 = vector.load %arg4[%c5, %c0_33, %c0_34] : memref<9x8x8xbf16, #tpu.memory_space<vmem>>, vector<1x8x8xbf16>
    %44 = vector.shape_cast %43 : vector<1x8x8xbf16> to vector<8x8xbf16>
    %cst_35 = arith.constant dense<0.000000e+00> : vector<8x324xf32>
    %45 = tpu.matmul %44, %42, %cst_35 {dimension_numbers = #tpu.dot_dimension_numbers<[1], [0], [0], [1], [0, 0, 1, 1], [], []>} : vector<8x8xbf16>, vector<8x324xbf16>, vector<8x324xf32> -> vector<8x324xf32>
    %46 = arith.addf %41, %45 : vector<8x324xf32>
    %c0_36 = arith.constant 0 : index
    %c145 = arith.constant 145 : index
    %47 = vector.load %arg11[%c0_36, %c145] : memref<8x512xbf16, #tpu.memory_space<vmem>>, vector<8x324xbf16>
    %c6 = arith.constant 6 : index
    %c0_37 = arith.constant 0 : index
    %c0_38 = arith.constant 0 : index
    %48 = vector.load %arg4[%c6, %c0_37, %c0_38] : memref<9x8x8xbf16, #tpu.memory_space<vmem>>, vector<1x8x8xbf16>
    %49 = vector.shape_cast %48 : vector<1x8x8xbf16> to vector<8x8xbf16>
    %cst_39 = arith.constant dense<0.000000e+00> : vector<8x324xf32>
    %50 = tpu.matmul %49, %47, %cst_39 {dimension_numbers = #tpu.dot_dimension_numbers<[1], [0], [0], [1], [0, 0, 1, 1], [], []>} : vector<8x8xbf16>, vector<8x324xbf16>, vector<8x324xf32> -> vector<8x324xf32>
    %51 = arith.addf %46, %50 : vector<8x324xf32>
    %c0_40 = arith.constant 0 : index
    %c146 = arith.constant 146 : index
    %52 = vector.load %arg11[%c0_40, %c146] : memref<8x512xbf16, #tpu.memory_space<vmem>>, vector<8x324xbf16>
    %c7 = arith.constant 7 : index
    %c0_41 = arith.constant 0 : index
    %c0_42 = arith.constant 0 : index
    %53 = vector.load %arg4[%c7, %c0_41, %c0_42] : memref<9x8x8xbf16, #tpu.memory_space<vmem>>, vector<1x8x8xbf16>
    %54 = vector.shape_cast %53 : vector<1x8x8xbf16> to vector<8x8xbf16>
    %cst_43 = arith.constant dense<0.000000e+00> : vector<8x324xf32>
    %55 = tpu.matmul %54, %52, %cst_43 {dimension_numbers = #tpu.dot_dimension_numbers<[1], [0], [0], [1], [0, 0, 1, 1], [], []>} : vector<8x8xbf16>, vector<8x324xbf16>, vector<8x324xf32> -> vector<8x324xf32>
    %56 = arith.addf %51, %55 : vector<8x324xf32>
    %c0_44 = arith.constant 0 : index
    %c147 = arith.constant 147 : index
    %57 = vector.load %arg11[%c0_44, %c147] : memref<8x512xbf16, #tpu.memory_space<vmem>>, vector<8x324xbf16>
    %c8 = arith.constant 8 : index
    %c0_45 = arith.constant 0 : index
    %c0_46 = arith.constant 0 : index
    %58 = vector.load %arg4[%c8, %c0_45, %c0_46] : memref<9x8x8xbf16, #tpu.memory_space<vmem>>, vector<1x8x8xbf16>
    %59 = vector.shape_cast %58 : vector<1x8x8xbf16> to vector<8x8xbf16>
    %cst_47 = arith.constant dense<0.000000e+00> : vector<8x324xf32>
    %60 = tpu.matmul %59, %57, %cst_47 {dimension_numbers = #tpu.dot_dimension_numbers<[1], [0], [0], [1], [0, 0, 1, 1], [], []>} : vector<8x8xbf16>, vector<8x324xbf16>, vector<8x324xf32> -> vector<8x324xf32>
    %61 = arith.addf %56, %60 : vector<8x324xf32>
    %c0_48 = arith.constant 0 : index
    %c0_49 = arith.constant 0 : index
    %62 = vector.load %arg10[%c0_48, %c0_49] : memref<8x324xf32, #tpu.memory_space<vmem>>, vector<8x324xf32>
    tpu.vector_store %arg10[%c0_48, %c0_49], %61 {strides = array<i32>} : memref<8x324xf32, #tpu.memory_space<vmem>>, vector<8x324xf32>,
    %c0_i32_50 = arith.constant 0 : i32
    %63 = arith.cmpi eq, %arg1, %c0_i32_50 : i32
    %64 = arith.extui %63 : i1 to i32
    %c0_i32_51 = arith.constant 0 : i32
    %65 = arith.cmpi ne, %64, %c0_i32_51 : i32
    scf.if %65 {
      %c0_52 = arith.constant 0 : index
      %c0_53 = arith.constant 0 : index
      %66 = vector.load %arg10[%c0_52, %c0_53] : memref<8x324xf32, #tpu.memory_space<vmem>>, vector<8x324xf32>
      %c0_54 = arith.constant 0 : index
      %c0_55 = arith.constant 0 : index
      %67 = vector.load %arg6[%c0_54, %c0_55] : memref<1x324xf32, #tpu.memory_space<vmem>>, vector<1x324xf32>
      %68 = vector.broadcast %67 : vector<1x324xf32> to vector<8x324xf32>
      %69 = arith.mulf %66, %68 : vector<8x324xf32>
      %cst_56 = arith.constant dense<0.000000e+00> : vector<8xf32>
      %70 = vector.multi_reduction <add>, %69, %cst_56 [1] : vector<8x324xf32> to vector<8xf32>
      %71 = vector.shape_cast %70 : vector<8xf32> to vector<8x1xf32>
      %72 = vector.shape_cast %71 : vector<8x1xf32> to vector<1x8x1xf32>
      %c0_57 = arith.constant 0 : index
      %c0_58 = arith.constant 0 : index
      %c0_59 = arith.constant 0 : index
      %73 = vector.load %arg8[%c0_57, %c0_58, %c0_59] : memref<1x8x1xf32, #tpu.memory_space<vmem>>, vector<1x8x1xf32>
      tpu.vector_store %arg8[%c0_57, %c0_58, %c0_59], %72 {strides = array<i32>} : memref<1x8x1xf32, #tpu.memory_space<vmem>>, vector<1x8x1xf32>,
      %74 = arith.mulf %69, %66 : vector<8x324xf32>
      %cst_60 = arith.constant dense<0.000000e+00> : vector<8xf32>
      %75 = vector.multi_reduction <add>, %74, %cst_60 [1] : vector<8x324xf32> to vector<8xf32>
      %76 = vector.shape_cast %75 : vector<8xf32> to vector<8x1xf32>
      %77 = vector.shape_cast %76 : vector<8x1xf32> to vector<1x8x1xf32>
      %c0_61 = arith.constant 0 : index
      %c0_62 = arith.constant 0 : index
      %c0_63 = arith.constant 0 : index
      %78 = vector.load %arg9[%c0_61, %c0_62, %c0_63] : memref<1x8x1xf32, #tpu.memory_space<vmem>>, vector<1x8x1xf32>
      tpu.vector_store %arg9[%c0_61, %c0_62, %c0_63], %77 {strides = array<i32>} : memref<1x8x1xf32, #tpu.memory_space<vmem>>, vector<1x8x1xf32>,
      %79 = arith.truncf %66 : vector<8x324xf32> to vector<8x324xbf16>
      %c0_64 = arith.constant 0 : index
      %c0_65 = arith.constant 0 : index
      %c0_66 = arith.constant 0 : index
      %80 = vector.load %arg7[%c0_64, %c0_65, %c0_66] : memref<1x8x324xbf16, #tpu.memory_space<vmem>>, vector<1x8x324xbf16>
      %81 = vector.shape_cast %80 : vector<1x8x324xbf16> to vector<8x324xbf16>
      %82 = vector.shape_cast %79 : vector<8x324xbf16> to vector<1x8x324xbf16>
      tpu.vector_store %arg7[%c0_64, %c0_65, %c0_66], %82 {strides = array<i32>} : memref<1x8x324xbf16, #tpu.memory_space<vmem>>, vector<1x8x324xbf16>,
    } else {
    }
    return
  }
  func.func @transform_0(%arg0: i32, %arg1: i32) -> (i32, i32, i32) {
    %c0_i32 = arith.constant 0 : i32
    %c0_i32_0 = arith.constant 0 : i32
    return %arg0, %arg1, %c0_i32 : i32, i32, i32
  }
  func.func @transform_1(%arg0: i32, %arg1: i32) -> (i32, i32) {
    %c0_i32 = arith.constant 0 : i32
    %c0_i32_0 = arith.constant 0 : i32
    return %arg1, %c0_i32 : i32, i32
  }
  func.func @transform_2(%arg0: i32, %arg1: i32) -> (i32, i32, i32) {
    %c0_i32 = arith.constant 0 : i32
    %c0_i32_0 = arith.constant 0 : i32
    %c0_i32_1 = arith.constant 0 : i32
    return %c0_i32, %c0_i32_0, %arg1 : i32, i32, i32
  }
  func.func @transform_3(%arg0: i32, %arg1: i32) -> (i32, i32) {
    %c0_i32 = arith.constant 0 : i32
    %c0_i32_0 = arith.constant 0 : i32
    %c0_i32_1 = arith.constant 0 : i32
    return %c0_i32, %c0_i32_0 : i32, i32
  }
  func.func @transform_4(%arg0: i32, %arg1: i32) -> (i32, i32) {
    %c0_i32 = arith.constant 0 : i32
    %c0_i32_0 = arith.constant 0 : i32
    %c0_i32_1 = arith.constant 0 : i32
    return %c0_i32, %c0_i32_0 : i32, i32
  }
  func.func @transform_5(%arg0: i32, %arg1: i32) -> (i32, i32, i32) {
    %c0_i32 = arith.constant 0 : i32
    %c0_i32_0 = arith.constant 0 : i32
    %c0_i32_1 = arith.constant 0 : i32
    return %arg0, %c0_i32, %c0_i32_0 : i32, i32, i32
  }
  func.func @transform_6(%arg0: i32, %arg1: i32) -> (i32, i32, i32) {
    %c0_i32 = arith.constant 0 : i32
    %c0_i32_0 = arith.constant 0 : i32
    %c0_i32_1 = arith.constant 0 : i32
    return %arg0, %c0_i32, %c0_i32_0 : i32, i32, i32
  }
  func.func @transform_7(%arg0: i32, %arg1: i32) -> (i32, i32, i32) {
    %c0_i32 = arith.constant 0 : i32
    %c0_i32_0 = arith.constant 0 : i32
    %c0_i32_1 = arith.constant 0 : i32
    return %arg0, %c0_i32, %c0_i32_0 : i32, i32, i32
  }
}

</mosaic_0001>

<llo_original>
// kernel: mul.3
$region0: #{mul.3}
  #allocation0 [shape = 's32[1]{0}', space=sflag, size = 0x4, scoped, tag = 'scoped memory for mul.3']
  %s0 = inlined_call_operand.vmem [shape: f32[8,1], index: 0, kind: input, shape index: {}]
  %s1 = inlined_call_operand.vmem [shape: f32[8,1], index: 1, kind: input, shape index: {}]
  %s2 = inlined_call_operand.vmem [shape: f32[8,1], index: 2, kind: output, shape index: {}]
  %v3 = vld [vmem:[%s0] sm:$0xff]
  %v4 = vld [vmem:[%s1] sm:$0xff]
  %5 = xla_tuple %v3, %v4
  %6 = xla_tuple %5
  %v7 = vmul.f32 %v3, %v4
  %8 = xla_tuple %v7
  %9 = vst [vmem:[%s2] sm:$0xff] %v7

// kernel: up_forward.5
$region0: #{up_forward.5}
  #allocation0 [shape = 'u32[]', space=smem, size = 0x4, offset = 0x4, fixed_abs, tag = 'smem constant byte address 0x4 - core index']
  #allocation1 [shape = 'u32[72,128]{1,0:T(1,128)}', space=vmem, size = 0x9000, scoped, tag = 'internal scratch']
  %s0 = inlined_call_operand.vmem [shape: bf16[2,8,324], index: 0, kind: input, shape index: {}]
  %s1 = inlined_call_operand.vmem [shape: f32[8,1], index: 1, kind: input, shape index: {}]
  %s2 = inlined_call_operand.vmem [shape: f32[8,1], index: 2, kind: input, shape index: {}]
  %s3 = inlined_call_operand.vmem [shape: f32[2,8,324], index: 3, kind: output, shape index: {}]
  %s4 = sld [smem:[#allocation0]]
  $region45: #{up_forward.5} parent=0
    _
  %s6 = ssub.s32 1, %s4
  %s7 = scalar_select 0, %s6, %s4
  loop: start=0, step=1, limit=4
  $region2: #{up_forward.5} parent=0 // loop_pre_header
    _
  $region3: #{up_forward.5} parent=0 // loop_header
    %s9 = sphi 0, %s13
    %p10 = scmp.ge.s32.totalorder %s9, 4
    %s19 = sphi 0, %s21
    %s22 = sphi 0, %s19
    %s23 = sphi 0, %s22
    %s39 = sphi 0, %s23
    %s43 = sphi 0, %s43
    %s45 = sphi 0, %s43
    %s46 = sphi 0, %s45
    %s60 = sphi 0, %s46
    %s64 = sphi 0, %s64
    %s66 = sphi 0, %s64
    %s67 = sphi 0, %s66
    %s81 = sphi 0, %s67
    %s87 = sphi 0, %s89
    %s90 = sphi 0, %s87
    %s91 = sphi 0, %s90
    %s107 = sphi 0, %s91
  $region4: #{up_forward.5} parent=0 // loop_header_branch
    %12 = sbr.rel (%p10) target = $region8
  $region5: #{up_forward.5} parent=0 // loop_body
    %s14 = ssub.s32 %s9, 1
    %s15 = ssub.s32 %s9, 2
    %s16 = sadd.s32 %s9, 1
    %s17 = ssub.s32 %s9, %s16
    %p18 = scmp.eq.s32.totalorder %s17, 0
    %s20 = sadd.s32 %s19, 1
    %s21 = scalar_select %p18, %s19, %s20
    %p24 = pneg %p18
    %p25 = scmp.eq.s32.totalorder %s9, 1
    %p26 = por %p24, %p25
    %p27 = scmp.ne.s32.totalorder %s19, %s22
    %p28 = scmp.eq.s32.totalorder %s9, 0
    %p29 = por %p27, %p28
    %p30 = scmp.ne.s32.totalorder %s19, %s22
    %p31 = scmp.eq.s32.totalorder %s14, 1
    %p32 = por %p30, %p31
    %p33 = scmp.ne.s32.totalorder %s22, %s23
    %p34 = scmp.eq.s32.totalorder %s14, 0
    %p35 = por %p33, %p34
    %p36 = scmp.ne.s32.totalorder %s22, %s23
    %p37 = scmp.eq.s32.totalorder %s15, 1
    %p38 = por %p36, %p37
    %p40 = scmp.ne.s32.totalorder %s23, %s39
    %p41 = scmp.eq.s32.totalorder %s15, 0
    %p42 = por %p40, %p41
    %s44 = sadd.s32 %s43, 1
    %p47 = scmp.eq.s32.totalorder %s9, 1
    %p48 = scmp.ne.s32.totalorder %s43, %s45
    %p49 = scmp.eq.s32.totalorder %s9, 0
    %p50 = por %p48, %p49
    %p51 = scmp.ne.s32.totalorder %s43, %s45
    %p52 = scmp.eq.s32.totalorder %s14, 1
    %p53 = por %p51, %p52
    %p54 = scmp.ne.s32.totalorder %s45, %s46
    %p55 = scmp.eq.s32.totalorder %s14, 0
    %p56 = por %p54, %p55
    %p57 = scmp.ne.s32.totalorder %s45, %s46
    %p58 = scmp.eq.s32.totalorder %s15, 1
    %p59 = por %p57, %p58
    %p61 = scmp.ne.s32.totalorder %s46, %s60
    %p62 = scmp.eq.s32.totalorder %s15, 0
    %p63 = por %p61, %p62
    %s65 = sadd.s32 %s64, 1
    %p68 = scmp.eq.s32.totalorder %s9, 1
    %p69 = scmp.ne.s32.totalorder %s64, %s66
    %p70 = scmp.eq.s32.totalorder %s9, 0
    %p71 = por %p69, %p70
    %p72 = scmp.ne.s32.totalorder %s64, %s66
    %p73 = scmp.eq.s32.totalorder %s14, 1
    %p74 = por %p72, %p73
    %p75 = scmp.ne.s32.totalorder %s66, %s67
    %p76 = scmp.eq.s32.totalorder %s14, 0
    %p77 = por %p75, %p76
    %p78 = scmp.ne.s32.totalorder %s66, %s67
    %p79 = scmp.eq.s32.totalorder %s15, 1
    %p80 = por %p78, %p79
    %p82 = scmp.ne.s32.totalorder %s67, %s81
    %p83 = scmp.eq.s32.totalorder %s15, 0
    %p84 = por %p82, %p83
    %s85 = ssub.s32 %s9, %s16
    %p86 = scmp.eq.s32.totalorder %s85, 0
    %s88 = sadd.s32 %s87, 1
    %s89 = scalar_select %p86, %s87, %s88
    %p92 = pneg %p86
    %p93 = scmp.eq.s32.totalorder %s9, 1
    %p94 = por %p92, %p93
    %p95 = scmp.ne.s32.totalorder %s87, %s90
    %p96 = scmp.eq.s32.totalorder %s9, 0
    %p97 = por %p95, %p96
    %p98 = scmp.ne.s32.totalorder %s87, %s90
    %p99 = scmp.eq.s32.totalorder %s14, 1
    %p100 = por %p98, %p99
    %p101 = scmp.ne.s32.totalorder %s90, %s91
    %p102 = scmp.eq.s32.totalorder %s14, 0
    %p103 = por %p101, %p102
    %p104 = scmp.ne.s32.totalorder %s90, %s91
    %p105 = scmp.eq.s32.totalorder %s15, 1
    %p106 = por %p104, %p105
    %p108 = scmp.ne.s32.totalorder %s91, %s107
    %p109 = scmp.eq.s32.totalorder %s15, 0
    %p110 = por %p108, %p109
    %p111 = scmp.le.s32.totalorder 1, %s9
    %p112 = scmp.lt.s32.totalorder %s9, 3
    %p113 = pnand %p111, %p112
    %p114 = pneg %p113
    // Predicated region
    $region9: #{up_forward.5} parent=5 // pred_check
      _
    $region10: #{up_forward.5} parent=5 // pred_check_branch
      %116 = sbr.rel (%p113) target = $region12
    $region11: #{up_forward.5} parent=5 // pred_region
      %s117 = ssub.s32 %s9, 1
      // Predicated region
      $region13: #{up_forward.5} parent=11 // pred_check
        %p118 = pneg %p56
      $region14: #{up_forward.5} parent=11 // pred_check_branch
        %120 = sbr.rel (%p118) target = $region16
      $region15: #{up_forward.5} parent=11 // pred_region
        _
      $region16: #{up_forward.5} parent=11 // pred_fallthru
        _
      // Predicated region
      $region17: #{up_forward.5} parent=11 // pred_check
        %p121 = pneg %p77
      $region18: #{up_forward.5} parent=11 // pred_check_branch
        %123 = sbr.rel (%p121) target = $region20
      $region19: #{up_forward.5} parent=11 // pred_region
        _
      $region20: #{up_forward.5} parent=11 // pred_fallthru
        _
    $region12: #{up_forward.5} parent=5 // pred_fallthru
      _
    %p124 = scmp.lt.s32.totalorder %s9, 2
    // Predicated region
    $region21: #{up_forward.5} parent=5 // pred_check
      %p125 = pneg %p124
    $region22: #{up_forward.5} parent=5 // pred_check_branch
      %127 = sbr.rel (%p125) target = $region24
    $region23: #{up_forward.5} parent=5 // pred_region
      // Predicated region
      $region25: #{up_forward.5} parent=23 // pred_check
        %p128 = pneg %p29
      $region26: #{up_forward.5} parent=23 // pred_check_branch
        %130 = sbr.rel (%p128) target = $region28
      $region27: #{up_forward.5} parent=23 // pred_region
        %p131 = scmp.lt.s32.totalorder %s9, 1
        %s132 = scalar_select %p131, %s9, 1
        %s133 = smul.addr %s132, 3
        %s134 = smul.addr %s133, 4
        %s135 = scalar_lea.vmem %s0, %s134
      $region28: #{up_forward.5} parent=23 // pred_fallthru
        _
    $region24: #{up_forward.5} parent=5 // pred_fallthru
      _
    %p136 = scmp.le.s32.totalorder 1, %s9
    %p137 = scmp.lt.s32.totalorder %s9, 3
    %p138 = pnand %p136, %p137
    %p139 = pneg %p138
    // Predicated region
    $region29: #{up_forward.5} parent=5 // pred_check
      _
    $region30: #{up_forward.5} parent=5 // pred_check_branch
      %141 = sbr.rel (%p138) target = $region32
    $region31: #{up_forward.5} parent=5 // pred_region
      %s142 = ssub.s32 %s9, 1
      %p143 = scmp.lt.s32.totalorder %s14, 1
      %s144 = scalar_select %p143, %s14, 1
      %s145 = smul.addr %s144, 3
      %s146 = smul.addr %s145, 4
      %s147 = scalar_lea.vmem %s0, %s146
      %p148 = pneg %p35
      %p149 = pneg %p32
      %p150 = pneg %p56
      %p151 = pneg %p53
      %p152 = pneg %p77
      %p153 = pneg %p74
      %p154 = pneg %p103
      %p155 = pneg %p100
      %p156 = scmp.lt.s32.totalorder %s14, 1
      %s157 = scalar_select %p156, %s14, 1
      %s158 = smul.addr %s157, 3
      %s159 = smul.addr %s158, 8
      %s160 = scalar_lea.vmem %s3, %s159
      %p161 = scmp.lt.s32.totalorder %s14, 1
      %s162 = scalar_select %p161, %s14, 1
      %s163 = smul.addr %s162, 3
      %s164 = smul.addr %s163, 4
      %s165 = scalar_lea.vmem %s0, %s164
      %p166 = scmp.lt.s32.totalorder %s14, 1
      %s167 = scalar_select %p166, %s14, 1
      %s168 = smul.addr %s167, 3
      %s169 = smul.addr %s168, 8
      %s170 = scalar_lea.vmem %s3, %s169
      %v171 = vld [vmem:[%s165] sm:$0xff]
      %v172 = vld [vmem:[%s165 + $0x8] sm:$0xf]
      %v173 = vunpack.c.l.bf16 %v171
      %v174 = vunpack.c.h.bf16 %v171
      %v175 = vunpack.c.l.bf16 %v172
      %v176 = vld [vmem:[%s1] sm:$0xff]
      %178 = vset.pattern.permute.xlu0 0
      %179 = vperm.xlu0 %178, %v176
      %v180 = vpop.permute.xlu0 %179
      %v182 = vmul.f32 %v173, %v180
      %v183 = vmul.f32 %v174, %v180
      %v184 = vmul.f32 %v175, %v180
      %v185 = vld [vmem:[%s2] sm:$0xff]
      %187 = vset.pattern.permute.xlu0 0
      %188 = vperm.xlu0 %187, %v185
      %v189 = vpop.permute.xlu0 %188
      %v191 = vadd.f32 %v182, %v189
      %v192 = vadd.f32 %v183, %v189
      %v193 = vadd.f32 %v184, %v189
      %v194 = vmax.f32 %v191, 0.0
      %v195 = vmax.f32 %v192, 0.0
      %v196 = vmax.f32 %v193, 0.0
      %197 = vst [vmem:[%s170] sm:$0xff] %v194
      %198 = vst [vmem:[%s170 + $0x8] sm:$0xff] %v195
      %vm199 = vcmask 556032
      %200 = vst.msk [vmem:[%s170 + $0x10] sm:$0xff] %vm199, %v196
      %p201 = scmp.lt.s32.totalorder %s14, 1
      %s202 = scalar_select %p201, %s14, 1
      %s203 = smul.addr %s202, 3
      %s204 = smul.addr %s203, 8
      %s205 = scalar_lea.vmem %s3, %s204
      // Predicated region
      $region33: #{up_forward.5} parent=31 // pred_check
        %p206 = pneg %p100
      $region34: #{up_forward.5} parent=31 // pred_check_branch
        %208 = sbr.rel (%p206) target = $region36
      $region35: #{up_forward.5} parent=31 // pred_region
        _
      $region36: #{up_forward.5} parent=31 // pred_fallthru
        _
    $region32: #{up_forward.5} parent=5 // pred_fallthru
      _
    %p209 = scmp.le.s32.totalorder 2, %s9
    // Predicated region
    $region37: #{up_forward.5} parent=5 // pred_check
      %p210 = pneg %p209
    $region38: #{up_forward.5} parent=5 // pred_check_branch
      %212 = sbr.rel (%p210) target = $region40
    $region39: #{up_forward.5} parent=5 // pred_region
      %s213 = ssub.s32 %s9, 2
      // Predicated region
      $region41: #{up_forward.5} parent=39 // pred_check
        %p214 = pneg %p106
      $region42: #{up_forward.5} parent=39 // pred_check_branch
        %216 = sbr.rel (%p214) target = $region44
      $region43: #{up_forward.5} parent=39 // pred_region
        %p217 = scmp.lt.s32.totalorder %s15, 1
        %s218 = scalar_select %p217, %s15, 1
        %s219 = smul.addr %s218, 3
        %s220 = smul.addr %s219, 8
        %s221 = scalar_lea.vmem %s3, %s220
      $region44: #{up_forward.5} parent=39 // pred_fallthru
        _
    $region40: #{up_forward.5} parent=5 // pred_fallthru
      _
  $region6: #{up_forward.5} parent=0 // loop_footer
    %s13 = sadd.s32 1, %s9
  $region7: #{up_forward.5} parent=0 // loop_footer_branch
    %8 = sbr.rel target = $region3
  $region8: #{up_forward.5} parent=0 // loop_exit
    _

// kernel: up_forward.3
$region0: #{up_forward.3}
  #allocation0 [shape = 'u32[]', space=smem, size = 0x4, offset = 0x4, fixed_abs, tag = 'smem constant byte address 0x4 - core index']
  #allocation1 [shape = 'u32[72,128]{1,0:T(1,128)}', space=vmem, size = 0x9000, scoped, tag = 'internal scratch']
  #allocation2 [shape = 'f32[8,324]{1,0:T(8,128)}', space=vmem, size = 0x3000, scoped, tag = 'scratch operand']
  %s0 = inlined_call_operand.vmem [shape: bf16[2,8,512], index: 0, kind: input, shape index: {}]
  %s1 = inlined_call_operand.vmem [shape: bf16[9,8,8], index: 1, kind: input, shape index: {}]
  %s2 = inlined_call_operand.vmem [shape: f32[1,324], index: 2, kind: input, shape index: {}]
  %s3 = inlined_call_operand.vmem [shape: bf16[2,8,512], index: 3, kind: output, shape index: {0}]
  %s4 = inlined_call_operand.vmem [shape: f32[2,8,1], index: 4, kind: output, shape index: {1}]
  %s5 = inlined_call_operand.vmem [shape: f32[2,8,1], index: 5, kind: output, shape index: {2}]
  %6 = xla_tuple %s3, %s4, %s5
  %s7 = sld [smem:[#allocation0]]
  $region69: #{up_forward.3} parent=0
    _
  %s9 = ssub.s32 1, %s7
  %s10 = scalar_select 0, %s9, %s7
  loop: start=0, step=1, limit=4
  $region2: #{up_forward.3} parent=0 // loop_pre_header
    _
  $region3: #{up_forward.3} parent=0 // loop_header
    %s12 = sphi 0, %s16
    %p13 = scmp.ge.s32.totalorder %s12, 4
    %s19 = sphi 0, %s31
    %s20 = sphi 0, %s27
    %s21 = sphi 0, %s19
    %s22 = sphi 0, %s20
    %s23 = sphi 0, %s21
    %s24 = sphi 0, %s22
    %s36 = sphi 0, %s38
    %s39 = sphi 0, %s36
    %s40 = sphi 0, %s39
    %s56 = sphi 0, %s40
    %s62 = sphi 0, %s64
    %s65 = sphi 0, %s62
    %s66 = sphi 0, %s65
    %s82 = sphi 0, %s66
    %s86 = sphi 0, %s86
    %s88 = sphi 0, %s86
    %s89 = sphi 0, %s88
    %s103 = sphi 0, %s89
    %s109 = sphi 0, %s111
    %s112 = sphi 0, %s109
    %s113 = sphi 0, %s112
    %s129 = sphi 0, %s113
    %s135 = sphi 0, %s137
    %s138 = sphi 0, %s135
    %s139 = sphi 0, %s138
    %s155 = sphi 0, %s139
    %s161 = sphi 0, %s163
    %s164 = sphi 0, %s161
    %s165 = sphi 0, %s164
    %s181 = sphi 0, %s165
  $region4: #{up_forward.3} parent=0 // loop_header_branch
    %15 = sbr.rel (%p13) target = $region8
  $region5: #{up_forward.3} parent=0 // loop_body
    %s17 = ssub.s32 %s12, 1
    %s18 = ssub.s32 %s12, 2
    %s25 = sadd.s32 1, %s20
    %p26 = scmp.ge.s32.totalorder %s25, 1
    %s27 = scalar_select %p26, 0, %s25
    %s28 = sadd.s32 1, %s19
    %s29 = scalar_select %p26, %s28, %s19
    %p30 = scmp.ge.s32.totalorder %s29, 2
    %s31 = scalar_select %p30, 0, %s29
    %s32 = ssub.s32 %s19, %s31
    %s33 = ssub.s32 %s20, %s27
    %s34 = sor.u32 %s32, %s33
    %p35 = scmp.eq.s32.totalorder %s34, 0
    %s37 = sadd.s32 %s36, 1
    %s38 = scalar_select %p35, %s36, %s37
    %p41 = pneg %p35
    %p42 = scmp.eq.s32.totalorder %s12, 1
    %p43 = por %p41, %p42
    %p44 = scmp.ne.s32.totalorder %s36, %s39
    %p45 = scmp.eq.s32.totalorder %s12, 0
    %p46 = por %p44, %p45
    %p47 = scmp.ne.s32.totalorder %s36, %s39
    %p48 = scmp.eq.s32.totalorder %s17, 1
    %p49 = por %p47, %p48
    %p50 = scmp.ne.s32.totalorder %s39, %s40
    %p51 = scmp.eq.s32.totalorder %s17, 0
    %p52 = por %p50, %p51
    %p53 = scmp.ne.s32.totalorder %s39, %s40
    %p54 = scmp.eq.s32.totalorder %s18, 1
    %p55 = por %p53, %p54
    %p57 = scmp.ne.s32.totalorder %s40, %s56
    %p58 = scmp.eq.s32.totalorder %s18, 0
    %p59 = por %p57, %p58
    %s60 = ssub.s32 %s20, %s27
    %p61 = scmp.eq.s32.totalorder %s60, 0
    %s63 = sadd.s32 %s62, 1
    %s64 = scalar_select %p61, %s62, %s63
    %p67 = pneg %p61
    %p68 = scmp.eq.s32.totalorder %s12, 1
    %p69 = por %p67, %p68
    %p70 = scmp.ne.s32.totalorder %s62, %s65
    %p71 = scmp.eq.s32.totalorder %s12, 0
    %p72 = por %p70, %p71
    %p73 = scmp.ne.s32.totalorder %s62, %s65
    %p74 = scmp.eq.s32.totalorder %s17, 1
    %p75 = por %p73, %p74
    %p76 = scmp.ne.s32.totalorder %s65, %s66
    %p77 = scmp.eq.s32.totalorder %s17, 0
    %p78 = por %p76, %p77
    %p79 = scmp.ne.s32.totalorder %s65, %s66
    %p80 = scmp.eq.s32.totalorder %s18, 1
    %p81 = por %p79, %p80
    %p83 = scmp.ne.s32.totalorder %s66, %s82
    %p84 = scmp.eq.s32.totalorder %s18, 0
    %p85 = por %p83, %p84
    %s87 = sadd.s32 %s86, 1
    %p90 = scmp.eq.s32.totalorder %s12, 1
    %p91 = scmp.ne.s32.totalorder %s86, %s88
    %p92 = scmp.eq.s32.totalorder %s12, 0
    %p93 = por %p91, %p92
    %p94 = scmp.ne.s32.totalorder %s86, %s88
    %p95 = scmp.eq.s32.totalorder %s17, 1
    %p96 = por %p94, %p95
    %p97 = scmp.ne.s32.totalorder %s88, %s89
    %p98 = scmp.eq.s32.totalorder %s17, 0
    %p99 = por %p97, %p98
    %p100 = scmp.ne.s32.totalorder %s88, %s89
    %p101 = scmp.eq.s32.totalorder %s18, 1
    %p102 = por %p100, %p101
    %p104 = scmp.ne.s32.totalorder %s89, %s103
    %p105 = scmp.eq.s32.totalorder %s18, 0
    %p106 = por %p104, %p105
    %s107 = ssub.s32 %s19, %s31
    %p108 = scmp.eq.s32.totalorder %s107, 0
    %s110 = sadd.s32 %s109, 1
    %s111 = scalar_select %p108, %s109, %s110
    %p114 = pneg %p108
    %p115 = scmp.eq.s32.totalorder %s12, 1
    %p116 = por %p114, %p115
    %p117 = scmp.ne.s32.totalorder %s109, %s112
    %p118 = scmp.eq.s32.totalorder %s12, 0
    %p119 = por %p117, %p118
    %p120 = scmp.ne.s32.totalorder %s109, %s112
    %p121 = scmp.eq.s32.totalorder %s17, 1
    %p122 = por %p120, %p121
    %p123 = scmp.ne.s32.totalorder %s112, %s113
    %p124 = scmp.eq.s32.totalorder %s17, 0
    %p125 = por %p123, %p124
    %p126 = scmp.ne.s32.totalorder %s112, %s113
    %p127 = scmp.eq.s32.totalorder %s18, 1
    %p128 = por %p126, %p127
    %p130 = scmp.ne.s32.totalorder %s113, %s129
    %p131 = scmp.eq.s32.totalorder %s18, 0
    %p132 = por %p130, %p131
    %s133 = ssub.s32 %s19, %s31
    %p134 = scmp.eq.s32.totalorder %s133, 0
    %s136 = sadd.s32 %s135, 1
    %s137 = scalar_select %p134, %s135, %s136
    %p140 = pneg %p134
    %p141 = scmp.eq.s32.totalorder %s12, 1
    %p142 = por %p140, %p141
    %p143 = scmp.ne.s32.totalorder %s135, %s138
    %p144 = scmp.eq.s32.totalorder %s12, 0
    %p145 = por %p143, %p144
    %p146 = scmp.ne.s32.totalorder %s135, %s138
    %p147 = scmp.eq.s32.totalorder %s17, 1
    %p148 = por %p146, %p147
    %p149 = scmp.ne.s32.totalorder %s138, %s139
    %p150 = scmp.eq.s32.totalorder %s17, 0
    %p151 = por %p149, %p150
    %p152 = scmp.ne.s32.totalorder %s138, %s139
    %p153 = scmp.eq.s32.totalorder %s18, 1
    %p154 = por %p152, %p153
    %p156 = scmp.ne.s32.totalorder %s139, %s155
    %p157 = scmp.eq.s32.totalorder %s18, 0
    %p158 = por %p156, %p157
    %s159 = ssub.s32 %s19, %s31
    %p160 = scmp.eq.s32.totalorder %s159, 0
    %s162 = sadd.s32 %s161, 1
    %s163 = scalar_select %p160, %s161, %s162
    %p166 = pneg %p160
    %p167 = scmp.eq.s32.totalorder %s12, 1
    %p168 = por %p166, %p167
    %p169 = scmp.ne.s32.totalorder %s161, %s164
    %p170 = scmp.eq.s32.totalorder %s12, 0
    %p171 = por %p169, %p170
    %p172 = scmp.ne.s32.totalorder %s161, %s164
    %p173 = scmp.eq.s32.totalorder %s17, 1
    %p174 = por %p172, %p173
    %p175 = scmp.ne.s32.totalorder %s164, %s165
    %p176 = scmp.eq.s32.totalorder %s17, 0
    %p177 = por %p175, %p176
    %p178 = scmp.ne.s32.totalorder %s164, %s165
    %p179 = scmp.eq.s32.totalorder %s18, 1
    %p180 = por %p178, %p179
    %p182 = scmp.ne.s32.totalorder %s165, %s181
    %p183 = scmp.eq.s32.totalorder %s18, 0
    %p184 = por %p182, %p183
    %p185 = scmp.le.s32.totalorder 1, %s12
    %p186 = scmp.lt.s32.totalorder %s12, 3
    %p187 = pnand %p185, %p186
    %p188 = pneg %p187
    // Predicated region
    $region9: #{up_forward.3} parent=5 // pred_check
      _
    $region10: #{up_forward.3} parent=5 // pred_check_branch
      %190 = sbr.rel (%p187) target = $region12
    $region11: #{up_forward.3} parent=5 // pred_region
      %s191 = ssub.s32 %s12, 1
      // Predicated region
      $region13: #{up_forward.3} parent=11 // pred_check
        %p192 = pneg %p78
      $region14: #{up_forward.3} parent=11 // pred_check_branch
        %194 = sbr.rel (%p192) target = $region16
      $region15: #{up_forward.3} parent=11 // pred_region
        %p195 = scmp.lt.s32.totalorder %s22, 0
        %s196 = scalar_select %p195, %s22, 0
        %s197 = smul.addr %s196, 4
        %s198 = scalar_lea.vmem %s1, %s197
      $region16: #{up_forward.3} parent=11 // pred_fallthru
        _
      // Predicated region
      $region17: #{up_forward.3} parent=11 // pred_check
        %p199 = pneg %p99
      $region18: #{up_forward.3} parent=11 // pred_check_branch
        %201 = sbr.rel (%p199) target = $region20
      $region19: #{up_forward.3} parent=11 // pred_region
        _
      $region20: #{up_forward.3} parent=11 // pred_fallthru
        _
    $region12: #{up_forward.3} parent=5 // pred_fallthru
      _
    %p202 = scmp.lt.s32.totalorder %s12, 2
    // Predicated region
    $region21: #{up_forward.3} parent=5 // pred_check
      %p203 = pneg %p202
    $region22: #{up_forward.3} parent=5 // pred_check_branch
      %205 = sbr.rel (%p203) target = $region24
    $region23: #{up_forward.3} parent=5 // pred_region
      // Predicated region
      $region25: #{up_forward.3} parent=23 // pred_check
        %p206 = pneg %p46
      $region26: #{up_forward.3} parent=23 // pred_check_branch
        %208 = sbr.rel (%p206) target = $region28
      $region27: #{up_forward.3} parent=23 // pred_region
        %p209 = scmp.lt.s32.totalorder %s19, 1
        %s210 = scalar_select %p209, %s19, 1
        %p211 = scmp.lt.s32.totalorder %s20, 0
        %s212 = scalar_select %p211, %s20, 0
        %s213 = smul.addr %s212, 4
        %s214 = smul.addr %s210, 4
        %s215 = sadd.s32 %s213, %s214
        %s216 = smul.addr %s215, 4
        %s217 = scalar_lea.vmem %s0, %s216
      $region28: #{up_forward.3} parent=23 // pred_fallthru
        _
    $region24: #{up_forward.3} parent=5 // pred_fallthru
      _
    %p218 = scmp.le.s32.totalorder 1, %s12
    %p219 = scmp.lt.s32.totalorder %s12, 3
    %p220 = pnand %p218, %p219
    %p221 = pneg %p220
    // Predicated region
    $region29: #{up_forward.3} parent=5 // pred_check
      _
    $region30: #{up_forward.3} parent=5 // pred_check_branch
      %223 = sbr.rel (%p220) target = $region32
    $region31: #{up_forward.3} parent=5 // pred_region
      %s224 = ssub.s32 %s12, 1
      %p225 = scmp.lt.s32.totalorder %s21, 1
      %s226 = scalar_select %p225, %s21, 1
      %p227 = scmp.lt.s32.totalorder %s22, 0
      %s228 = scalar_select %p227, %s22, 0
      %s229 = smul.addr %s228, 4
      %s230 = smul.addr %s226, 4
      %s231 = sadd.s32 %s229, %s230
      %s232 = smul.addr %s231, 4
      %s233 = scalar_lea.vmem %s0, %s232
      %p234 = pneg %p52
      %p235 = pneg %p49
      %p236 = scmp.lt.s32.totalorder %s22, 0
      %s237 = scalar_select %p236, %s22, 0
      %s238 = smul.addr %s237, 4
      %s239 = scalar_lea.vmem %s1, %s238
      %p240 = pneg %p78
      %p241 = pneg %p75
      %p242 = pneg %p99
      %p243 = pneg %p96
      %p244 = pneg %p125
      %p245 = pneg %p122
      %p246 = scmp.lt.s32.totalorder %s21, 1
      %s247 = scalar_select %p246, %s21, 1
      %s248 = smul.addr %s247, 4
      %s249 = smul.addr %s248, 4
      %s250 = scalar_lea.vmem %s3, %s249
      %p251 = pneg %p151
      %p252 = pneg %p148
      %p253 = scmp.lt.s32.totalorder %s21, 1
      %s254 = scalar_select %p253, %s21, 1
      %s255 = smul.addr %s254, 8
      %s256 = scalar_lea.vmem %s4, %s255
      %p257 = pneg %p177
      %p258 = pneg %p174
      %p259 = scmp.lt.s32.totalorder %s21, 1
      %s260 = scalar_select %p259, %s21, 1
      %s261 = smul.addr %s260, 8
      %s262 = scalar_lea.vmem %s5, %s261
      %p263 = scmp.lt.s32.totalorder %s21, 1
      %s264 = scalar_select %p263, %s21, 1
      %p265 = scmp.lt.s32.totalorder %s22, 0
      %s266 = scalar_select %p265, %s22, 0
      %s267 = smul.addr %s266, 4
      %s268 = smul.addr %s264, 4
      %s269 = sadd.s32 %s267, %s268
      %s270 = smul.addr %s269, 4
      %s271 = scalar_lea.vmem %s0, %s270
      %p272 = scmp.lt.s32.totalorder %s22, 0
      %s273 = scalar_select %p272, %s22, 0
      %s274 = smul.addr %s273, 4
      %s275 = scalar_lea.vmem %s1, %s274
      %p276 = scmp.lt.s32.totalorder %s21, 1
      %s277 = scalar_select %p276, %s21, 1
      %s278 = smul.addr %s277, 4
      %s279 = smul.addr %s278, 4
      %s280 = scalar_lea.vmem %s3, %s279
      %p281 = scmp.lt.s32.totalorder %s21, 1
      %s282 = scalar_select %p281, %s21, 1
      %s283 = smul.addr %s282, 8
      %s284 = scalar_lea.vmem %s4, %s283
      %p285 = scmp.lt.s32.totalorder %s21, 1
      %s286 = scalar_select %p285, %s21, 1
      %s287 = smul.addr %s286, 8
      %s288 = scalar_lea.vmem %s5, %s287
      %p290 = scmp.eq.s32.totalorder %s22, 0
      // Predicated region
      $region33: #{up_forward.3} parent=31 // pred_check
        %p291 = pneg %p290
      $region34: #{up_forward.3} parent=31 // pred_check_branch
        %293 = sbr.rel (%p291) target = $region36
      $region35: #{up_forward.3} parent=31 // pred_region
        %294 = vst [vmem:[#allocation2] sm:$0xff] 0.0
        %295 = vst [vmem:[#allocation2 + $0x8] sm:$0xff] 0.0
        %vm296 = vcmask 556032
        %297 = vst.msk [vmem:[#allocation2 + $0x10] sm:$0xff] %vm296, 0.0
      $region36: #{up_forward.3} parent=31 // pred_fallthru
        _
      %v298 = vld [vmem:[#allocation2] sm:$0xff]
      %v299 = vld [vmem:[#allocation2 + $0x8] sm:$0xff]
      %v300 = vld [vmem:[#allocation2 + $0x10] sm:$0xff]
      %v301 = vld [vmem:[%s271] sm:$0xff]
      %v302 = vld [vmem:[%s271 + $0x8] sm:$0xff]
      %v303 = vld [vmem:[%s275] sm:$0xf]
      %v306 = vunpack.c.l.b16 %v301
      %v307 = vunpack.c.h.b16 %v301
      %v308 = vunpack.c.l.b16 %v302
      %v309 = vunpack.c.h.b16 %v302
      %v310 = vpack.c.b16 %v306, %v306
      %v311 = vpack.c.b16 %v307, %v307
      %v312 = vpack.c.b16 %v308, %v308
      %v313 = vpack.c.b16 %v309, %v309
      %314 = vrot.lane.b32.xlu0 %v310, 19
      %v315 = vpop.permute.xlu0 %314
      %316 = vrot.lane.b32.xlu0 %v311, 19
      %v317 = vpop.permute.xlu0 %316
      %318 = vrot.lane.b32.xlu0 %v312, 19
      %v319 = vpop.permute.xlu0 %318
      %320 = vrot.lane.b32.xlu0 %v313, 19
      %v321 = vpop.permute.xlu0 %320
      %vm322 = vcmask 154624
      %v323 = vsel %vm322, %v315, %v317
      %v324 = vsel %vm322, %v317, %v319
      %v325 = vsel %vm322, %v319, %v321
      %vm326 = vcmask 64512
      %v328 = vsel %vm326, %v303, 0
      %vm330 = vcmask 1043456
      %v332 = vsel %vm330, %v323, 0
      %v335 = vsel %vm330, %v324, 0
      %v338 = vsel %vm330, %v325, 0
      %340 = vmatpush.bf16.msra.mxu0 0
      %341 = vmatpush.bf16.msra.mxu0 0
      %342 = vmatpush.bf16.msra.mxu0 0
      %343 = vmatpush.bf16.msra.mxu0 0
      %344 = vmatpush.bf16.msra.mxu0 0
      %345 = vmatpush.bf16.msra.mxu0 0
      %346 = vmatpush.bf16.msra.mxu0 0
      %347 = vmatpush.bf16.msra.mxu0 %v332
      %348 = vmatmul.bf16.gmra.mxu0 %v328
      %v349 = vpop.f32.mrf.mxu0
      %v350 = vadd.f32 0.0, %v349
      %v351 = vpop.f32.mrf.mxu0
      %352 = vdwg.mxu0
      %353 = vmatpush.bf16.msra.mxu0 0
      %354 = vmatpush.bf16.msra.mxu0 0
      %355 = vmatpush.bf16.msra.mxu0 0
      %356 = vmatpush.bf16.msra.mxu0 0
      %357 = vmatpush.bf16.msra.mxu0 0
      %358 = vmatpush.bf16.msra.mxu0 0
      %359 = vmatpush.bf16.msra.mxu0 0
      %360 = vmatpush.bf16.msra.mxu0 %v335
      %361 = vmatmul.bf16.gmra.mxu0 %v328
      %v362 = vpop.f32.mrf.mxu0
      %v363 = vadd.f32 0.0, %v362
      %v364 = vpop.f32.mrf.mxu0
      %365 = vdwg.mxu0
      %366 = vmatpush.bf16.msra.mxu0 0
      %367 = vmatpush.bf16.msra.mxu0 0
      %368 = vmatpush.bf16.msra.mxu0 0
      %369 = vmatpush.bf16.msra.mxu0 0
      %370 = vmatpush.bf16.msra.mxu0 0
      %371 = vmatpush.bf16.msra.mxu0 0
      %372 = vmatpush.bf16.msra.mxu0 0
      %373 = vmatpush.bf16.msra.mxu0 %v338
      %374 = vmatmul.bf16.gmra.mxu0 %v328
      %v375 = vpop.f32.mrf.mxu0
      %v376 = vadd.f32 0.0, %v375
      %v377 = vpop.f32.mrf.mxu0
      %378 = vdwg.mxu0
      %v379 = vadd.f32 %v298, %v350
      %v380 = vadd.f32 %v299, %v363
      %v381 = vadd.f32 %v300, %v376
      %s382 = scalar_lea.vmem %s275, 4
      %v383 = vld [vmem:[%s382] sm:$0xf]
      %384 = vrot.lane.b32.xlu0 %v310, 18
      %v385 = vpop.permute.xlu0 %384
      %386 = vrot.lane.b32.xlu0 %v311, 18
      %v387 = vpop.permute.xlu0 %386
      %388 = vrot.lane.b32.xlu0 %v312, 18
      %v389 = vpop.permute.xlu0 %388
      %390 = vrot.lane.b32.xlu0 %v313, 18
      %v391 = vpop.permute.xlu0 %390
      %vm392 = vcmask 146432
      %v393 = vsel %vm392, %v385, %v387
      %v394 = vsel %vm392, %v387, %v389
      %v395 = vsel %vm392, %v389, %v391
      %v397 = vsel %vm326, %v383, 0
      %v400 = vsel %vm330, %v393, 0
      %v403 = vsel %vm330, %v394, 0
      %v406 = vsel %vm330, %v395, 0
      %408 = vmatpush.bf16.msra.mxu0 0
      %409 = vmatpush.bf16.msra.mxu0 0
      %410 = vmatpush.bf16.msra.mxu0 0
      %411 = vmatpush.bf16.msra.mxu0 0
      %412 = vmatpush.bf16.msra.mxu0 0
      %413 = vmatpush.bf16.msra.mxu0 0
      %414 = vmatpush.bf16.msra.mxu0 0
      %415 = vmatpush.bf16.msra.mxu0 %v400
      %416 = vmatmul.bf16.gmra.mxu0 %v397
      %v417 = vpop.f32.mrf.mxu0
      %v418 = vadd.f32 0.0, %v417
      %v419 = vpop.f32.mrf.mxu0
      %420 = vdwg.mxu0
      %421 = vmatpush.bf16.msra.mxu0 0
      %422 = vmatpush.bf16.msra.mxu0 0
      %423 = vmatpush.bf16.msra.mxu0 0
      %424 = vmatpush.bf16.msra.mxu0 0
      %425 = vmatpush.bf16.msra.mxu0 0
      %426 = vmatpush.bf16.msra.mxu0 0
      %427 = vmatpush.bf16.msra.mxu0 0
      %428 = vmatpush.bf16.msra.mxu0 %v403
      %429 = vmatmul.bf16.gmra.mxu0 %v397
      %v430 = vpop.f32.mrf.mxu0
      %v431 = vadd.f32 0.0, %v430
      %v432 = vpop.f32.mrf.mxu0
      %433 = vdwg.mxu0
      %434 = vmatpush.bf16.msra.mxu0 0
      %435 = vmatpush.bf16.msra.mxu0 0
      %436 = vmatpush.bf16.msra.mxu0 0
      %437 = vmatpush.bf16.msra.mxu0 0
      %438 = vmatpush.bf16.msra.mxu0 0
      %439 = vmatpush.bf16.msra.mxu0 0
      %440 = vmatpush.bf16.msra.mxu0 0
      %441 = vmatpush.bf16.msra.mxu0 %v406
      %442 = vmatmul.bf16.gmra.mxu0 %v397
      %v443 = vpop.f32.mrf.mxu0
      %v444 = vadd.f32 0.0, %v443
      %v445 = vpop.f32.mrf.mxu0
      %446 = vdwg.mxu0
      %v447 = vadd.f32 %v379, %v418
      %v448 = vadd.f32 %v380, %v431
      %v449 = vadd.f32 %v381, %v444
      %s450 = scalar_lea.vmem %s275, 8
      %v451 = vld [vmem:[%s450] sm:$0xf]
      %452 = vrot.lane.b32.xlu0 %v310, 17
      %v453 = vpop.permute.xlu0 %452
      %454 = vrot.lane.b32.xlu0 %v311, 17
      %v455 = vpop.permute.xlu0 %454
      %456 = vrot.lane.b32.xlu0 %v312, 17
      %v457 = vpop.permute.xlu0 %456
      %458 = vrot.lane.b32.xlu0 %v313, 17
      %v459 = vpop.permute.xlu0 %458
      %vm460 = vcmask 138240
      %v461 = vsel %vm460, %v453, %v455
      %v462 = vsel %vm460, %v455, %v457
      %v463 = vsel %vm460, %v457, %v459
      %v465 = vsel %vm326, %v451, 0
      %v468 = vsel %vm330, %v461, 0
      %v471 = vsel %vm330, %v462, 0
      %v474 = vsel %vm330, %v463, 0
      %476 = vmatpush.bf16.msra.mxu0 0
      %477 = vmatpush.bf16.msra.mxu0 0
      %478 = vmatpush.bf16.msra.mxu0 0
      %479 = vmatpush.bf16.msra.mxu0 0
      %480 = vmatpush.bf16.msra.mxu0 0
      %481 = vmatpush.bf16.msra.mxu0 0
      %482 = vmatpush.bf16.msra.mxu0 0
      %483 = vmatpush.bf16.msra.mxu0 %v468
      %484 = vmatmul.bf16.gmra.mxu0 %v465
      %v485 = vpop.f32.mrf.mxu0
      %v486 = vadd.f32 0.0, %v485
      %v487 = vpop.f32.mrf.mxu0
      %488 = vdwg.mxu0
      %489 = vmatpush.bf16.msra.mxu0 0
      %490 = vmatpush.bf16.msra.mxu0 0
      %491 = vmatpush.bf16.msra.mxu0 0
      %492 = vmatpush.bf16.msra.mxu0 0
      %493 = vmatpush.bf16.msra.mxu0 0
      %494 = vmatpush.bf16.msra.mxu0 0
      %495 = vmatpush.bf16.msra.mxu0 0
      %496 = vmatpush.bf16.msra.mxu0 %v471
      %497 = vmatmul.bf16.gmra.mxu0 %v465
      %v498 = vpop.f32.mrf.mxu0
      %v499 = vadd.f32 0.0, %v498
      %v500 = vpop.f32.mrf.mxu0
      %501 = vdwg.mxu0
      %502 = vmatpush.bf16.msra.mxu0 0
      %503 = vmatpush.bf16.msra.mxu0 0
      %504 = vmatpush.bf16.msra.mxu0 0
      %505 = vmatpush.bf16.msra.mxu0 0
      %506 = vmatpush.bf16.msra.mxu0 0
      %507 = vmatpush.bf16.msra.mxu0 0
      %508 = vmatpush.bf16.msra.mxu0 0
      %509 = vmatpush.bf16.msra.mxu0 %v474
      %510 = vmatmul.bf16.gmra.mxu0 %v465
      %v511 = vpop.f32.mrf.mxu0
      %v512 = vadd.f32 0.0, %v511
      %v513 = vpop.f32.mrf.mxu0
      %514 = vdwg.mxu0
      %v515 = vadd.f32 %v447, %v486
      %v516 = vadd.f32 %v448, %v499
      %v517 = vadd.f32 %v449, %v512
      %s518 = scalar_lea.vmem %s275, 12
      %v519 = vld [vmem:[%s518] sm:$0xf]
      %520 = vrot.lane.b32.xlu0 %v310, 1
      %v521 = vpop.permute.xlu0 %520
      %522 = vrot.lane.b32.xlu0 %v311, 1
      %v523 = vpop.permute.xlu0 %522
      %524 = vrot.lane.b32.xlu0 %v312, 1
      %v525 = vpop.permute.xlu0 %524
      %526 = vrot.lane.b32.xlu0 %v313, 1
      %v527 = vpop.permute.xlu0 %526
      %vm528 = vcmask 7168
      %v529 = vsel %vm528, %v521, %v523
      %v530 = vsel %vm528, %v523, %v525
      %v531 = vsel %vm528, %v525, %v527
      %v533 = vsel %vm326, %v519, 0
      %v536 = vsel %vm330, %v529, 0
      %v539 = vsel %vm330, %v530, 0
      %v542 = vsel %vm330, %v531, 0
      %544 = vmatpush.bf16.msra.mxu0 0
      %545 = vmatpush.bf16.msra.mxu0 0
      %546 = vmatpush.bf16.msra.mxu0 0
      %547 = vmatpush.bf16.msra.mxu0 0
      %548 = vmatpush.bf16.msra.mxu0 0
      %549 = vmatpush.bf16.msra.mxu0 0
      %550 = vmatpush.bf16.msra.mxu0 0
      %551 = vmatpush.bf16.msra.mxu0 %v536
      %552 = vmatmul.bf16.gmra.mxu0 %v533
      %v553 = vpop.f32.mrf.mxu0
      %v554 = vadd.f32 0.0, %v553
      %v555 = vpop.f32.mrf.mxu0
      %556 = vdwg.mxu0
      %557 = vmatpush.bf16.msra.mxu0 0
      %558 = vmatpush.bf16.msra.mxu0 0
      %559 = vmatpush.bf16.msra.mxu0 0
      %560 = vmatpush.bf16.msra.mxu0 0
      %561 = vmatpush.bf16.msra.mxu0 0
      %562 = vmatpush.bf16.msra.mxu0 0
      %563 = vmatpush.bf16.msra.mxu0 0
      %564 = vmatpush.bf16.msra.mxu0 %v539
      %565 = vmatmul.bf16.gmra.mxu0 %v533
      %v566 = vpop.f32.mrf.mxu0
      %v567 = vadd.f32 0.0, %v566
      %v568 = vpop.f32.mrf.mxu0
      %569 = vdwg.mxu0
      %570 = vmatpush.bf16.msra.mxu0 0
      %571 = vmatpush.bf16.msra.mxu0 0
      %572 = vmatpush.bf16.msra.mxu0 0
      %573 = vmatpush.bf16.msra.mxu0 0
      %574 = vmatpush.bf16.msra.mxu0 0
      %575 = vmatpush.bf16.msra.mxu0 0
      %576 = vmatpush.bf16.msra.mxu0 0
      %577 = vmatpush.bf16.msra.mxu0 %v542
      %578 = vmatmul.bf16.gmra.mxu0 %v533
      %v579 = vpop.f32.mrf.mxu0
      %v580 = vadd.f32 0.0, %v579
      %v581 = vpop.f32.mrf.mxu0
      %582 = vdwg.mxu0
      %v583 = vadd.f32 %v515, %v554
      %v584 = vadd.f32 %v516, %v567
      %v585 = vadd.f32 %v517, %v580
      %v586 = vld [vmem:[%s271 + $0x4] sm:$0xff]
      %v587 = vld [vmem:[%s271 + $0xc] sm:$0xf]
      %s588 = scalar_lea.vmem %s275, 16
      %v589 = vld [vmem:[%s588] sm:$0xf]
      %v592 = vunpack.c.l.b16 %v586
      %v593 = vunpack.c.h.b16 %v586
      %v594 = vunpack.c.l.b16 %v587
      %v595 = vpack.c.b16 %v592, %v592
      %v596 = vpack.c.b16 %v593, %v593
      %v597 = vpack.c.b16 %v594, %v594
      %v599 = vsel %vm326, %v589, 0
      %v602 = vsel %vm330, %v595, 0
      %v605 = vsel %vm330, %v596, 0
      %v608 = vsel %vm330, %v597, 0
      %610 = vmatpush.bf16.msra.mxu0 0
      %611 = vmatpush.bf16.msra.mxu0 0
      %612 = vmatpush.bf16.msra.mxu0 0
      %613 = vmatpush.bf16.msra.mxu0 0
      %614 = vmatpush.bf16.msra.mxu0 0
      %615 = vmatpush.bf16.msra.mxu0 0
      %616 = vmatpush.bf16.msra.mxu0 0
      %617 = vmatpush.bf16.msra.mxu0 %v602
      %618 = vmatmul.bf16.gmra.mxu0 %v599
      %v619 = vpop.f32.mrf.mxu0
      %v620 = vadd.f32 0.0, %v619
      %v621 = vpop.f32.mrf.mxu0
      %622 = vdwg.mxu0
      %623 = vmatpush.bf16.msra.mxu0 0
      %624 = vmatpush.bf16.msra.mxu0 0
      %625 = vmatpush.bf16.msra.mxu0 0
      %626 = vmatpush.bf16.msra.mxu0 0
      %627 = vmatpush.bf16.msra.mxu0 0
      %628 = vmatpush.bf16.msra.mxu0 0
      %629 = vmatpush.bf16.msra.mxu0 0
      %630 = vmatpush.bf16.msra.mxu0 %v605
      %631 = vmatmul.bf16.gmra.mxu0 %v599
      %v632 = vpop.f32.mrf.mxu0
      %v633 = vadd.f32 0.0, %v632
      %v634 = vpop.f32.mrf.mxu0
      %635 = vdwg.mxu0
      %636 = vmatpush.bf16.msra.mxu0 0
      %637 = vmatpush.bf16.msra.mxu0 0
      %638 = vmatpush.bf16.msra.mxu0 0
      %639 = vmatpush.bf16.msra.mxu0 0
      %640 = vmatpush.bf16.msra.mxu0 0
      %641 = vmatpush.bf16.msra.mxu0 0
      %642 = vmatpush.bf16.msra.mxu0 0
      %643 = vmatpush.bf16.msra.mxu0 %v608
      %644 = vmatmul.bf16.gmra.mxu0 %v599
      %v645 = vpop.f32.mrf.mxu0
      %v646 = vadd.f32 0.0, %v645
      %v647 = vpop.f32.mrf.mxu0
      %648 = vdwg.mxu0
      %v649 = vadd.f32 %v583, %v620
      %v650 = vadd.f32 %v584, %v633
      %v651 = vadd.f32 %v585, %v646
      %s652 = scalar_lea.vmem %s275, 20
      %v653 = vld [vmem:[%s652] sm:$0xf]
      %654 = vrot.lane.b32.xlu0 %v595, 127
      %v655 = vpop.permute.xlu0 %654
      %656 = vrot.lane.b32.xlu0 %v596, 127
      %v657 = vpop.permute.xlu0 %656
      %658 = vrot.lane.b32.xlu0 %v597, 127
      %v659 = vpop.permute.xlu0 %658
      %vm660 = vcmask 1039360
      %v661 = vsel %vm660, %v655, %v657
      %v662 = vsel %vm660, %v657, %v659
      %v664 = vsel %vm326, %v653, 0
      %v667 = vsel %vm330, %v661, 0
      %v670 = vsel %vm330, %v662, 0
      %v673 = vsel %vm330, %v659, 0
      %675 = vmatpush.bf16.msra.mxu0 0
      %676 = vmatpush.bf16.msra.mxu0 0
      %677 = vmatpush.bf16.msra.mxu0 0
      %678 = vmatpush.bf16.msra.mxu0 0
      %679 = vmatpush.bf16.msra.mxu0 0
      %680 = vmatpush.bf16.msra.mxu0 0
      %681 = vmatpush.bf16.msra.mxu0 0
      %682 = vmatpush.bf16.msra.mxu0 %v667
      %683 = vmatmul.bf16.gmra.mxu0 %v664
      %v684 = vpop.f32.mrf.mxu0
      %v685 = vadd.f32 0.0, %v684
      %v686 = vpop.f32.mrf.mxu0
      %687 = vdwg.mxu0
      %688 = vmatpush.bf16.msra.mxu0 0
      %689 = vmatpush.bf16.msra.mxu0 0
      %690 = vmatpush.bf16.msra.mxu0 0
      %691 = vmatpush.bf16.msra.mxu0 0
      %692 = vmatpush.bf16.msra.mxu0 0
      %693 = vmatpush.bf16.msra.mxu0 0
      %694 = vmatpush.bf16.msra.mxu0 0
      %695 = vmatpush.bf16.msra.mxu0 %v670
      %696 = vmatmul.bf16.gmra.mxu0 %v664
      %v697 = vpop.f32.mrf.mxu0
      %v698 = vadd.f32 0.0, %v697
      %v699 = vpop.f32.mrf.mxu0
      %700 = vdwg.mxu0
      %701 = vmatpush.bf16.msra.mxu0 0
      %702 = vmatpush.bf16.msra.mxu0 0
      %703 = vmatpush.bf16.msra.mxu0 0
      %704 = vmatpush.bf16.msra.mxu0 0
      %705 = vmatpush.bf16.msra.mxu0 0
      %706 = vmatpush.bf16.msra.mxu0 0
      %707 = vmatpush.bf16.msra.mxu0 0
      %708 = vmatpush.bf16.msra.mxu0 %v673
      %709 = vmatmul.bf16.gmra.mxu0 %v664
      %v710 = vpop.f32.mrf.mxu0
      %v711 = vadd.f32 0.0, %v710
      %v712 = vpop.f32.mrf.mxu0
      %713 = vdwg.mxu0
      %v714 = vadd.f32 %v649, %v685
      %v715 = vadd.f32 %v650, %v698
      %v716 = vadd.f32 %v651, %v711
      %s717 = scalar_lea.vmem %s275, 24
      %v718 = vld [vmem:[%s717] sm:$0xf]
      %719 = vrot.lane.b32.xlu0 %v595, 111
      %v720 = vpop.permute.xlu0 %719
      %721 = vrot.lane.b32.xlu0 %v596, 111
      %v722 = vpop.permute.xlu0 %721
      %723 = vrot.lane.b32.xlu0 %v597, 111
      %v724 = vpop.permute.xlu0 %723
      %vm725 = vcmask 908288
      %v726 = vsel %vm725, %v720, %v722
      %v727 = vsel %vm725, %v722, %v724
      %v729 = vsel %vm326, %v718, 0
      %v732 = vsel %vm330, %v726, 0
      %v735 = vsel %vm330, %v727, 0
      %v738 = vsel %vm330, %v724, 0
      %740 = vmatpush.bf16.msra.mxu0 0
      %741 = vmatpush.bf16.msra.mxu0 0
      %742 = vmatpush.bf16.msra.mxu0 0
      %743 = vmatpush.bf16.msra.mxu0 0
      %744 = vmatpush.bf16.msra.mxu0 0
      %745 = vmatpush.bf16.msra.mxu0 0
      %746 = vmatpush.bf16.msra.mxu0 0
      %747 = vmatpush.bf16.msra.mxu0 %v732
      %748 = vmatmul.bf16.gmra.mxu0 %v729
      %v749 = vpop.f32.mrf.mxu0
      %v750 = vadd.f32 0.0, %v749
      %v751 = vpop.f32.mrf.mxu0
      %752 = vdwg.mxu0
      %753 = vmatpush.bf16.msra.mxu0 0
      %754 = vmatpush.bf16.msra.mxu0 0
      %755 = vmatpush.bf16.msra.mxu0 0
      %756 = vmatpush.bf16.msra.mxu0 0
      %757 = vmatpush.bf16.msra.mxu0 0
      %758 = vmatpush.bf16.msra.mxu0 0
      %759 = vmatpush.bf16.msra.mxu0 0
      %760 = vmatpush.bf16.msra.mxu0 %v735
      %761 = vmatmul.bf16.gmra.mxu0 %v729
      %v762 = vpop.f32.mrf.mxu0
      %v763 = vadd.f32 0.0, %v762
      %v764 = vpop.f32.mrf.mxu0
      %765 = vdwg.mxu0
      %766 = vmatpush.bf16.msra.mxu0 0
      %767 = vmatpush.bf16.msra.mxu0 0
      %768 = vmatpush.bf16.msra.mxu0 0
      %769 = vmatpush.bf16.msra.mxu0 0
      %770 = vmatpush.bf16.msra.mxu0 0
      %771 = vmatpush.bf16.msra.mxu0 0
      %772 = vmatpush.bf16.msra.mxu0 0
      %773 = vmatpush.bf16.msra.mxu0 %v738
      %774 = vmatmul.bf16.gmra.mxu0 %v729
      %v775 = vpop.f32.mrf.mxu0
      %v776 = vadd.f32 0.0, %v775
      %v777 = vpop.f32.mrf.mxu0
      %778 = vdwg.mxu0
      %v779 = vadd.f32 %v714, %v750
      %v780 = vadd.f32 %v715, %v763
      %v781 = vadd.f32 %v716, %v776
      %s782 = scalar_lea.vmem %s275, 28
      %v783 = vld [vmem:[%s782] sm:$0xf]
      %784 = vrot.lane.b32.xlu0 %v595, 110
      %v785 = vpop.permute.xlu0 %784
      %786 = vrot.lane.b32.xlu0 %v596, 110
      %v787 = vpop.permute.xlu0 %786
      %788 = vrot.lane.b32.xlu0 %v597, 110
      %v789 = vpop.permute.xlu0 %788
      %vm790 = vcmask 900096
      %v791 = vsel %vm790, %v785, %v787
      %v792 = vsel %vm790, %v787, %v789
      %v794 = vsel %vm326, %v783, 0
      %v797 = vsel %vm330, %v791, 0
      %v800 = vsel %vm330, %v792, 0
      %v803 = vsel %vm330, %v789, 0
      %805 = vmatpush.bf16.msra.mxu0 0
      %806 = vmatpush.bf16.msra.mxu0 0
      %807 = vmatpush.bf16.msra.mxu0 0
      %808 = vmatpush.bf16.msra.mxu0 0
      %809 = vmatpush.bf16.msra.mxu0 0
      %810 = vmatpush.bf16.msra.mxu0 0
      %811 = vmatpush.bf16.msra.mxu0 0
      %812 = vmatpush.bf16.msra.mxu0 %v797
      %813 = vmatmul.bf16.gmra.mxu0 %v794
      %v814 = vpop.f32.mrf.mxu0
      %v815 = vadd.f32 0.0, %v814
      %v816 = vpop.f32.mrf.mxu0
      %817 = vdwg.mxu0
      %818 = vmatpush.bf16.msra.mxu0 0
      %819 = vmatpush.bf16.msra.mxu0 0
      %820 = vmatpush.bf16.msra.mxu0 0
      %821 = vmatpush.bf16.msra.mxu0 0
      %822 = vmatpush.bf16.msra.mxu0 0
      %823 = vmatpush.bf16.msra.mxu0 0
      %824 = vmatpush.bf16.msra.mxu0 0
      %825 = vmatpush.bf16.msra.mxu0 %v800
      %826 = vmatmul.bf16.gmra.mxu0 %v794
      %v827 = vpop.f32.mrf.mxu0
      %v828 = vadd.f32 0.0, %v827
      %v829 = vpop.f32.mrf.mxu0
      %830 = vdwg.mxu0
      %831 = vmatpush.bf16.msra.mxu0 0
      %832 = vmatpush.bf16.msra.mxu0 0
      %833 = vmatpush.bf16.msra.mxu0 0
      %834 = vmatpush.bf16.msra.mxu0 0
      %835 = vmatpush.bf16.msra.mxu0 0
      %836 = vmatpush.bf16.msra.mxu0 0
      %837 = vmatpush.bf16.msra.mxu0 0
      %838 = vmatpush.bf16.msra.mxu0 %v803
      %839 = vmatmul.bf16.gmra.mxu0 %v794
      %v840 = vpop.f32.mrf.mxu0
      %v841 = vadd.f32 0.0, %v840
      %v842 = vpop.f32.mrf.mxu0
      %843 = vdwg.mxu0
      %v844 = vadd.f32 %v779, %v815
      %v845 = vadd.f32 %v780, %v828
      %v846 = vadd.f32 %v781, %v841
      %s847 = scalar_lea.vmem %s275, 32
      %v848 = vld [vmem:[%s847] sm:$0xf]
      %849 = vrot.lane.b32.xlu0 %v595, 109
      %v850 = vpop.permute.xlu0 %849
      %851 = vrot.lane.b32.xlu0 %v596, 109
      %v852 = vpop.permute.xlu0 %851
      %853 = vrot.lane.b32.xlu0 %v597, 109
      %v854 = vpop.permute.xlu0 %853
      %vm855 = vcmask 891904
      %v856 = vsel %vm855, %v850, %v852
      %v857 = vsel %vm855, %v852, %v854
      %v859 = vsel %vm326, %v848, 0
      %v862 = vsel %vm330, %v856, 0
      %v865 = vsel %vm330, %v857, 0
      %v868 = vsel %vm330, %v854, 0
      %870 = vmatpush.bf16.msra.mxu0 0
      %871 = vmatpush.bf16.msra.mxu0 0
      %872 = vmatpush.bf16.msra.mxu0 0
      %873 = vmatpush.bf16.msra.mxu0 0
      %874 = vmatpush.bf16.msra.mxu0 0
      %875 = vmatpush.bf16.msra.mxu0 0
      %876 = vmatpush.bf16.msra.mxu0 0
      %877 = vmatpush.bf16.msra.mxu0 %v862
      %878 = vmatmul.bf16.gmra.mxu0 %v859
      %v879 = vpop.f32.mrf.mxu0
      %v880 = vadd.f32 0.0, %v879
      %v881 = vpop.f32.mrf.mxu0
      %882 = vdwg.mxu0
      %883 = vmatpush.bf16.msra.mxu0 0
      %884 = vmatpush.bf16.msra.mxu0 0
      %885 = vmatpush.bf16.msra.mxu0 0
      %886 = vmatpush.bf16.msra.mxu0 0
      %887 = vmatpush.bf16.msra.mxu0 0
      %888 = vmatpush.bf16.msra.mxu0 0
      %889 = vmatpush.bf16.msra.mxu0 0
      %890 = vmatpush.bf16.msra.mxu0 %v865
      %891 = vmatmul.bf16.gmra.mxu0 %v859
      %v892 = vpop.f32.mrf.mxu0
      %v893 = vadd.f32 0.0, %v892
      %v894 = vpop.f32.mrf.mxu0
      %895 = vdwg.mxu0
      %896 = vmatpush.bf16.msra.mxu0 0
      %897 = vmatpush.bf16.msra.mxu0 0
      %898 = vmatpush.bf16.msra.mxu0 0
      %899 = vmatpush.bf16.msra.mxu0 0
      %900 = vmatpush.bf16.msra.mxu0 0
      %901 = vmatpush.bf16.msra.mxu0 0
      %902 = vmatpush.bf16.msra.mxu0 0
      %903 = vmatpush.bf16.msra.mxu0 %v868
      %904 = vmatmul.bf16.gmra.mxu0 %v859
      %v905 = vpop.f32.mrf.mxu0
      %v906 = vadd.f32 0.0, %v905
      %v907 = vpop.f32.mrf.mxu0
      %908 = vdwg.mxu0
      %v909 = vadd.f32 %v844, %v880
      %v910 = vadd.f32 %v845, %v893
      %v911 = vadd.f32 %v846, %v906
      %912 = vst [vmem:[#allocation2] sm:$0xff] %v909
      %913 = vst [vmem:[#allocation2 + $0x8] sm:$0xff] %v910
      %vm914 = vcmask 556032
      %915 = vst.msk [vmem:[#allocation2 + $0x10] sm:$0xff] %vm914, %v911
      // Predicated region
      $region37: #{up_forward.3} parent=31 // pred_check
        %p916 = pneg %p290
      $region38: #{up_forward.3} parent=31 // pred_check_branch
        %918 = sbr.rel (%p916) target = $region40
      $region39: #{up_forward.3} parent=31 // pred_region
        %v919 = vld [vmem:[#allocation2] sm:$0xff]
        %v920 = vld [vmem:[#allocation2 + $0x8] sm:$0xff]
        %v921 = vld [vmem:[#allocation2 + $0x10] sm:$0xff]
        %v922 = vld [vmem:[%s2] sm:$0x7]
        %v924 = vperm.slane %v922, 0
        %v925 = vperm.slane %v922, 1
        %v926 = vperm.slane %v922, 2
        %v930 = vmul.f32 %v919, %v924
        %v931 = vmul.f32 %v920, %v925
        %v932 = vmul.f32 %v921, %v926
        %v933 = vadd.f32 %v930, %v931
        %v934 = vsel %vm914, %v932, 0.0
        %v935 = vadd.f32 %v933, %v934
        %936 = vadd.xlane.f32.xlu0 %v935
        %v937 = vpop.xlane.xlu0 %936
        %vm938 = vcmask 7168
        %939 = vst.msk [vmem:[%s284] sm:$0xff] %vm938, %v937
        %v940 = vmul.f32 %v930, %v919
        %v941 = vmul.f32 %v931, %v920
        %v942 = vmul.f32 %v932, %v921
        %v943 = vadd.f32 %v940, %v941
        %v944 = vsel %vm914, %v942, 0.0
        %v945 = vadd.f32 %v943, %v944
        %946 = vadd.xlane.f32.xlu0 %v945
        %v947 = vpop.xlane.xlu0 %946
        %948 = vst.msk [vmem:[%s288] sm:$0xff] %vm938, %v947
        %949 = vst [vmem:[%s280] sm:$0xff] 0
        %950 = vst [vmem:[%s280 + $0x8] sm:$0xff] 0
        %v951 = vpack.c.bf16 %v920, %v919
        %v952 = vpack.c.bf16 %v921, %v921
        %953 = vst [vmem:[%s280 + $0x4] sm:$0xff] %v951
        %vm954 = vcmask 551936
        %955 = vst.msk [vmem:[%s280 + $0xc] sm:$0xf] %vm954, %v952
      $region40: #{up_forward.3} parent=31 // pred_fallthru
        _
      %p956 = scmp.lt.s32.totalorder %s21, 1
      %s957 = scalar_select %p956, %s21, 1
      %s958 = smul.addr %s957, 4
      %s959 = smul.addr %s958, 4
      %s960 = scalar_lea.vmem %s3, %s959
      %p961 = scmp.lt.s32.totalorder %s21, 1
      %s962 = scalar_select %p961, %s21, 1
      %s963 = smul.addr %s962, 8
      %s964 = scalar_lea.vmem %s4, %s963
      %p965 = scmp.lt.s32.totalorder %s21, 1
      %s966 = scalar_select %p965, %s21, 1
      %s967 = smul.addr %s966, 8
      %s968 = scalar_lea.vmem %s5, %s967
      // Predicated region
      $region41: #{up_forward.3} parent=31 // pred_check
        %p969 = pneg %p122
      $region42: #{up_forward.3} parent=31 // pred_check_branch
        %971 = sbr.rel (%p969) target = $region44
      $region43: #{up_forward.3} parent=31 // pred_region
        _
      $region44: #{up_forward.3} parent=31 // pred_fallthru
        _
      // Predicated region
      $region45: #{up_forward.3} parent=31 // pred_check
        %p972 = pneg %p148
      $region46: #{up_forward.3} parent=31 // pred_check_branch
        %974 = sbr.rel (%p972) target = $region48
      $region47: #{up_forward.3} parent=31 // pred_region
        _
      $region48: #{up_forward.3} parent=31 // pred_fallthru
        _
      // Predicated region
      $region49: #{up_forward.3} parent=31 // pred_check
        %p975 = pneg %p174
      $region50: #{up_forward.3} parent=31 // pred_check_branch
        %977 = sbr.rel (%p975) target = $region52
      $region51: #{up_forward.3} parent=31 // pred_region
        _
      $region52: #{up_forward.3} parent=31 // pred_fallthru
        _
    $region32: #{up_forward.3} parent=5 // pred_fallthru
      _
    %p978 = scmp.le.s32.totalorder 2, %s12
    // Predicated region
    $region53: #{up_forward.3} parent=5 // pred_check
      %p979 = pneg %p978
    $region54: #{up_forward.3} parent=5 // pred_check_branch
      %981 = sbr.rel (%p979) target = $region56
    $region55: #{up_forward.3} parent=5 // pred_region
      %s982 = ssub.s32 %s12, 2
      // Predicated region
      $region57: #{up_forward.3} parent=55 // pred_check
        %p983 = pneg %p128
      $region58: #{up_forward.3} parent=55 // pred_check_branch
        %985 = sbr.rel (%p983) target = $region60
      $region59: #{up_forward.3} parent=55 // pred_region
        %p986 = scmp.lt.s32.totalorder %s23, 1
        %s987 = scalar_select %p986, %s23, 1
        %s988 = smul.addr %s987, 4
        %s989 = smul.addr %s988, 4
        %s990 = scalar_lea.vmem %s3, %s989
      $region60: #{up_forward.3} parent=55 // pred_fallthru
        _
      // Predicated region
      $region61: #{up_forward.3} parent=55 // pred_check
        %p991 = pneg %p154
      $region62: #{up_forward.3} parent=55 // pred_check_branch
        %993 = sbr.rel (%p991) target = $region64
      $region63: #{up_forward.3} parent=55 // pred_region
        %p994 = scmp.lt.s32.totalorder %s23, 1
        %s995 = scalar_select %p994, %s23, 1
        %s996 = smul.addr %s995, 8
        %s997 = scalar_lea.vmem %s4, %s996
      $region64: #{up_forward.3} parent=55 // pred_fallthru
        _
      // Predicated region
      $region65: #{up_forward.3} parent=55 // pred_check
        %p998 = pneg %p180
      $region66: #{up_forward.3} parent=55 // pred_check_branch
        %1000 = sbr.rel (%p998) target = $region68
      $region67: #{up_forward.3} parent=55 // pred_region
        %p1001 = scmp.lt.s32.totalorder %s23, 1
        %s1002 = scalar_select %p1001, %s23, 1
        %s1003 = smul.addr %s1002, 8
        %s1004 = scalar_lea.vmem %s5, %s1003
      $region68: #{up_forward.3} parent=55 // pred_fallthru
        _
    $region56: #{up_forward.3} parent=5 // pred_fallthru
      _
  $region6: #{up_forward.3} parent=0 // loop_footer
    %s16 = sadd.s32 1, %s12
  $region7: #{up_forward.3} parent=0 // loop_footer_branch
    %11 = sbr.rel target = $region3
  $region8: #{up_forward.3} parent=0 // loop_exit
    _

// kernel: up_forward.4
$region0: #{up_forward.4}
  #allocation0 [shape = 'u32[]', space=smem, size = 0x4, offset = 0x4, fixed_abs, tag = 'smem constant byte address 0x4 - core index']
  #allocation1 [shape = 'u32[72,128]{1,0:T(1,128)}', space=vmem, size = 0x9000, scoped, tag = 'internal scratch']
  #allocation2 [shape = 'f32[8,324]{1,0:T(8,128)}', space=vmem, size = 0x3000, scoped, tag = 'scratch operand']
  #allocation3 [shape = 'bf16[8,512]{1,0:T(8,128)(2,1)}', space=vmem, size = 0x2000, scoped, tag = 'scratch operand']
  %s0 = inlined_call_operand.vmem [shape: bf16[2,8,512], index: 0, kind: input, shape index: {}]
  %s1 = inlined_call_operand.vmem [shape: f32[8,1], index: 1, kind: input, shape index: {}]
  %s2 = inlined_call_operand.vmem [shape: bf16[9,8,8], index: 2, kind: input, shape index: {}]
  %s3 = inlined_call_operand.vmem [shape: f32[1,512], index: 3, kind: input, shape index: {}]
  %s4 = inlined_call_operand.vmem [shape: f32[1,324], index: 4, kind: input, shape index: {}]
  %s5 = inlined_call_operand.vmem [shape: bf16[2,8,324], index: 5, kind: output, shape index: {0}]
  %s6 = inlined_call_operand.vmem [shape: f32[2,8,1], index: 6, kind: output, shape index: {1}]
  %s7 = inlined_call_operand.vmem [shape: f32[2,8,1], index: 7, kind: output, shape index: {2}]
  %8 = xla_tuple %s5, %s6, %s7
  %s9 = sld [smem:[#allocation0]]
  $region77: #{up_forward.4} parent=0
    _
  %s11 = ssub.s32 1, %s9
  %s12 = scalar_select 0, %s11, %s9
  loop: start=0, step=1, limit=4
  $region2: #{up_forward.4} parent=0 // loop_pre_header
    _
  $region3: #{up_forward.4} parent=0 // loop_header
    %s14 = sphi 0, %s18
    %p15 = scmp.ge.s32.totalorder %s14, 4
    %s21 = sphi 0, %s33
    %s22 = sphi 0, %s29
    %s23 = sphi 0, %s21
    %s24 = sphi 0, %s22
    %s25 = sphi 0, %s23
    %s26 = sphi 0, %s24
    %s38 = sphi 0, %s40
    %s41 = sphi 0, %s38
    %s42 = sphi 0, %s41
    %s58 = sphi 0, %s42
    %s64 = sphi 0, %s66
    %s67 = sphi 0, %s64
    %s68 = sphi 0, %s67
    %s84 = sphi 0, %s68
    %s90 = sphi 0, %s92
    %s93 = sphi 0, %s90
    %s94 = sphi 0, %s93
    %s110 = sphi 0, %s94
    %s114 = sphi 0, %s114
    %s116 = sphi 0, %s114
    %s117 = sphi 0, %s116
    %s131 = sphi 0, %s117
    %s135 = sphi 0, %s135
    %s137 = sphi 0, %s135
    %s138 = sphi 0, %s137
    %s152 = sphi 0, %s138
    %s158 = sphi 0, %s160
    %s161 = sphi 0, %s158
    %s162 = sphi 0, %s161
    %s178 = sphi 0, %s162
    %s184 = sphi 0, %s186
    %s187 = sphi 0, %s184
    %s188 = sphi 0, %s187
    %s204 = sphi 0, %s188
    %s210 = sphi 0, %s212
    %s213 = sphi 0, %s210
    %s214 = sphi 0, %s213
    %s230 = sphi 0, %s214
  $region4: #{up_forward.4} parent=0 // loop_header_branch
    %17 = sbr.rel (%p15) target = $region8
  $region5: #{up_forward.4} parent=0 // loop_body
    %s19 = ssub.s32 %s14, 1
    %s20 = ssub.s32 %s14, 2
    %s27 = sadd.s32 1, %s22
    %p28 = scmp.ge.s32.totalorder %s27, 1
    %s29 = scalar_select %p28, 0, %s27
    %s30 = sadd.s32 1, %s21
    %s31 = scalar_select %p28, %s30, %s21
    %p32 = scmp.ge.s32.totalorder %s31, 2
    %s33 = scalar_select %p32, 0, %s31
    %s34 = ssub.s32 %s21, %s33
    %s35 = ssub.s32 %s22, %s29
    %s36 = sor.u32 %s34, %s35
    %p37 = scmp.eq.s32.totalorder %s36, 0
    %s39 = sadd.s32 %s38, 1
    %s40 = scalar_select %p37, %s38, %s39
    %p43 = pneg %p37
    %p44 = scmp.eq.s32.totalorder %s14, 1
    %p45 = por %p43, %p44
    %p46 = scmp.ne.s32.totalorder %s38, %s41
    %p47 = scmp.eq.s32.totalorder %s14, 0
    %p48 = por %p46, %p47
    %p49 = scmp.ne.s32.totalorder %s38, %s41
    %p50 = scmp.eq.s32.totalorder %s19, 1
    %p51 = por %p49, %p50
    %p52 = scmp.ne.s32.totalorder %s41, %s42
    %p53 = scmp.eq.s32.totalorder %s19, 0
    %p54 = por %p52, %p53
    %p55 = scmp.ne.s32.totalorder %s41, %s42
    %p56 = scmp.eq.s32.totalorder %s20, 1
    %p57 = por %p55, %p56
    %p59 = scmp.ne.s32.totalorder %s42, %s58
    %p60 = scmp.eq.s32.totalorder %s20, 0
    %p61 = por %p59, %p60
    %s62 = ssub.s32 %s22, %s29
    %p63 = scmp.eq.s32.totalorder %s62, 0
    %s65 = sadd.s32 %s64, 1
    %s66 = scalar_select %p63, %s64, %s65
    %p69 = pneg %p63
    %p70 = scmp.eq.s32.totalorder %s14, 1
    %p71 = por %p69, %p70
    %p72 = scmp.ne.s32.totalorder %s64, %s67
    %p73 = scmp.eq.s32.totalorder %s14, 0
    %p74 = por %p72, %p73
    %p75 = scmp.ne.s32.totalorder %s64, %s67
    %p76 = scmp.eq.s32.totalorder %s19, 1
    %p77 = por %p75, %p76
    %p78 = scmp.ne.s32.totalorder %s67, %s68
    %p79 = scmp.eq.s32.totalorder %s19, 0
    %p80 = por %p78, %p79
    %p81 = scmp.ne.s32.totalorder %s67, %s68
    %p82 = scmp.eq.s32.totalorder %s20, 1
    %p83 = por %p81, %p82
    %p85 = scmp.ne.s32.totalorder %s68, %s84
    %p86 = scmp.eq.s32.totalorder %s20, 0
    %p87 = por %p85, %p86
    %s88 = ssub.s32 %s22, %s29
    %p89 = scmp.eq.s32.totalorder %s88, 0
    %s91 = sadd.s32 %s90, 1
    %s92 = scalar_select %p89, %s90, %s91
    %p95 = pneg %p89
    %p96 = scmp.eq.s32.totalorder %s14, 1
    %p97 = por %p95, %p96
    %p98 = scmp.ne.s32.totalorder %s90, %s93
    %p99 = scmp.eq.s32.totalorder %s14, 0
    %p100 = por %p98, %p99
    %p101 = scmp.ne.s32.totalorder %s90, %s93
    %p102 = scmp.eq.s32.totalorder %s19, 1
    %p103 = por %p101, %p102
    %p104 = scmp.ne.s32.totalorder %s93, %s94
    %p105 = scmp.eq.s32.totalorder %s19, 0
    %p106 = por %p104, %p105
    %p107 = scmp.ne.s32.totalorder %s93, %s94
    %p108 = scmp.eq.s32.totalorder %s20, 1
    %p109 = por %p107, %p108
    %p111 = scmp.ne.s32.totalorder %s94, %s110
    %p112 = scmp.eq.s32.totalorder %s20, 0
    %p113 = por %p111, %p112
    %s115 = sadd.s32 %s114, 1
    %p118 = scmp.eq.s32.totalorder %s14, 1
    %p119 = scmp.ne.s32.totalorder %s114, %s116
    %p120 = scmp.eq.s32.totalorder %s14, 0
    %p121 = por %p119, %p120
    %p122 = scmp.ne.s32.totalorder %s114, %s116
    %p123 = scmp.eq.s32.totalorder %s19, 1
    %p124 = por %p122, %p123
    %p125 = scmp.ne.s32.totalorder %s116, %s117
    %p126 = scmp.eq.s32.totalorder %s19, 0
    %p127 = por %p125, %p126
    %p128 = scmp.ne.s32.totalorder %s116, %s117
    %p129 = scmp.eq.s32.totalorder %s20, 1
    %p130 = por %p128, %p129
    %p132 = scmp.ne.s32.totalorder %s117, %s131
    %p133 = scmp.eq.s32.totalorder %s20, 0
    %p134 = por %p132, %p133
    %s136 = sadd.s32 %s135, 1
    %p139 = scmp.eq.s32.totalorder %s14, 1
    %p140 = scmp.ne.s32.totalorder %s135, %s137
    %p141 = scmp.eq.s32.totalorder %s14, 0
    %p142 = por %p140, %p141
    %p143 = scmp.ne.s32.totalorder %s135, %s137
    %p144 = scmp.eq.s32.totalorder %s19, 1
    %p145 = por %p143, %p144
    %p146 = scmp.ne.s32.totalorder %s137, %s138
    %p147 = scmp.eq.s32.totalorder %s19, 0
    %p148 = por %p146, %p147
    %p149 = scmp.ne.s32.totalorder %s137, %s138
    %p150 = scmp.eq.s32.totalorder %s20, 1
    %p151 = por %p149, %p150
    %p153 = scmp.ne.s32.totalorder %s138, %s152
    %p154 = scmp.eq.s32.totalorder %s20, 0
    %p155 = por %p153, %p154
    %s156 = ssub.s32 %s21, %s33
    %p157 = scmp.eq.s32.totalorder %s156, 0
    %s159 = sadd.s32 %s158, 1
    %s160 = scalar_select %p157, %s158, %s159
    %p163 = pneg %p157
    %p164 = scmp.eq.s32.totalorder %s14, 1
    %p165 = por %p163, %p164
    %p166 = scmp.ne.s32.totalorder %s158, %s161
    %p167 = scmp.eq.s32.totalorder %s14, 0
    %p168 = por %p166, %p167
    %p169 = scmp.ne.s32.totalorder %s158, %s161
    %p170 = scmp.eq.s32.totalorder %s19, 1
    %p171 = por %p169, %p170
    %p172 = scmp.ne.s32.totalorder %s161, %s162
    %p173 = scmp.eq.s32.totalorder %s19, 0
    %p174 = por %p172, %p173
    %p175 = scmp.ne.s32.totalorder %s161, %s162
    %p176 = scmp.eq.s32.totalorder %s20, 1
    %p177 = por %p175, %p176
    %p179 = scmp.ne.s32.totalorder %s162, %s178
    %p180 = scmp.eq.s32.totalorder %s20, 0
    %p181 = por %p179, %p180
    %s182 = ssub.s32 %s21, %s33
    %p183 = scmp.eq.s32.totalorder %s182, 0
    %s185 = sadd.s32 %s184, 1
    %s186 = scalar_select %p183, %s184, %s185
    %p189 = pneg %p183
    %p190 = scmp.eq.s32.totalorder %s14, 1
    %p191 = por %p189, %p190
    %p192 = scmp.ne.s32.totalorder %s184, %s187
    %p193 = scmp.eq.s32.totalorder %s14, 0
    %p194 = por %p192, %p193
    %p195 = scmp.ne.s32.totalorder %s184, %s187
    %p196 = scmp.eq.s32.totalorder %s19, 1
    %p197 = por %p195, %p196
    %p198 = scmp.ne.s32.totalorder %s187, %s188
    %p199 = scmp.eq.s32.totalorder %s19, 0
    %p200 = por %p198, %p199
    %p201 = scmp.ne.s32.totalorder %s187, %s188
    %p202 = scmp.eq.s32.totalorder %s20, 1
    %p203 = por %p201, %p202
    %p205 = scmp.ne.s32.totalorder %s188, %s204
    %p206 = scmp.eq.s32.totalorder %s20, 0
    %p207 = por %p205, %p206
    %s208 = ssub.s32 %s21, %s33
    %p209 = scmp.eq.s32.totalorder %s208, 0
    %s211 = sadd.s32 %s210, 1
    %s212 = scalar_select %p209, %s210, %s211
    %p215 = pneg %p209
    %p216 = scmp.eq.s32.totalorder %s14, 1
    %p217 = por %p215, %p216
    %p218 = scmp.ne.s32.totalorder %s210, %s213
    %p219 = scmp.eq.s32.totalorder %s14, 0
    %p220 = por %p218, %p219
    %p221 = scmp.ne.s32.totalorder %s210, %s213
    %p222 = scmp.eq.s32.totalorder %s19, 1
    %p223 = por %p221, %p222
    %p224 = scmp.ne.s32.totalorder %s213, %s214
    %p225 = scmp.eq.s32.totalorder %s19, 0
    %p226 = por %p224, %p225
    %p227 = scmp.ne.s32.totalorder %s213, %s214
    %p228 = scmp.eq.s32.totalorder %s20, 1
    %p229 = por %p227, %p228
    %p231 = scmp.ne.s32.totalorder %s214, %s230
    %p232 = scmp.eq.s32.totalorder %s20, 0
    %p233 = por %p231, %p232
    %p234 = scmp.le.s32.totalorder 1, %s14
    %p235 = scmp.lt.s32.totalorder %s14, 3
    %p236 = pnand %p234, %p235
    %p237 = pneg %p236
    // Predicated region
    $region9: #{up_forward.4} parent=5 // pred_check
      _
    $region10: #{up_forward.4} parent=5 // pred_check_branch
      %239 = sbr.rel (%p236) target = $region12
    $region11: #{up_forward.4} parent=5 // pred_region
      %s240 = ssub.s32 %s14, 1
      // Predicated region
      $region13: #{up_forward.4} parent=11 // pred_check
        %p241 = pneg %p80
      $region14: #{up_forward.4} parent=11 // pred_check_branch
        %243 = sbr.rel (%p241) target = $region16
      $region15: #{up_forward.4} parent=11 // pred_region
        %p244 = scmp.lt.s32.totalorder %s24, 0
        %s245 = scalar_select %p244, %s24, 0
        %s246 = smul.addr %s245, 8
        %s247 = scalar_lea.vmem %s1, %s246
      $region16: #{up_forward.4} parent=11 // pred_fallthru
        _
      // Predicated region
      $region17: #{up_forward.4} parent=11 // pred_check
        %p248 = pneg %p106
      $region18: #{up_forward.4} parent=11 // pred_check_branch
        %250 = sbr.rel (%p248) target = $region20
      $region19: #{up_forward.4} parent=11 // pred_region
        %p251 = scmp.lt.s32.totalorder %s24, 0
        %s252 = scalar_select %p251, %s24, 0
        %s253 = smul.addr %s252, 4
        %s254 = scalar_lea.vmem %s2, %s253
      $region20: #{up_forward.4} parent=11 // pred_fallthru
        _
      // Predicated region
      $region21: #{up_forward.4} parent=11 // pred_check
        %p255 = pneg %p127
      $region22: #{up_forward.4} parent=11 // pred_check_branch
        %257 = sbr.rel (%p255) target = $region24
      $region23: #{up_forward.4} parent=11 // pred_region
        _
      $region24: #{up_forward.4} parent=11 // pred_fallthru
        _
      // Predicated region
      $region25: #{up_forward.4} parent=11 // pred_check
        %p258 = pneg %p148
      $region26: #{up_forward.4} parent=11 // pred_check_branch
        %260 = sbr.rel (%p258) target = $region28
      $region27: #{up_forward.4} parent=11 // pred_region
        _
      $region28: #{up_forward.4} parent=11 // pred_fallthru
        _
    $region12: #{up_forward.4} parent=5 // pred_fallthru
      _
    %p261 = scmp.lt.s32.totalorder %s14, 2
    // Predicated region
    $region29: #{up_forward.4} parent=5 // pred_check
      %p262 = pneg %p261
    $region30: #{up_forward.4} parent=5 // pred_check_branch
      %264 = sbr.rel (%p262) target = $region32
    $region31: #{up_forward.4} parent=5 // pred_region
      // Predicated region
      $region33: #{up_forward.4} parent=31 // pred_check
        %p265 = pneg %p48
      $region34: #{up_forward.4} parent=31 // pred_check_branch
        %267 = sbr.rel (%p265) target = $region36
      $region35: #{up_forward.4} parent=31 // pred_region
        %p268 = scmp.lt.s32.totalorder %s21, 1
        %s269 = scalar_select %p268, %s21, 1
        %p270 = scmp.lt.s32.totalorder %s22, 0
        %s271 = scalar_select %p270, %s22, 0
        %s272 = smul.addr %s271, 4
        %s273 = smul.addr %s269, 4
        %s274 = sadd.s32 %s272, %s273
        %s275 = smul.addr %s274, 4
        %s276 = scalar_lea.vmem %s0, %s275
      $region36: #{up_forward.4} parent=31 // pred_fallthru
        _
    $region32: #{up_forward.4} parent=5 // pred_fallthru
      _
    %p277 = scmp.le.s32.totalorder 1, %s14
    %p278 = scmp.lt.s32.totalorder %s14, 3
    %p279 = pnand %p277, %p278
    %p280 = pneg %p279
    // Predicated region
    $region37: #{up_forward.4} parent=5 // pred_check
      _
    $region38: #{up_forward.4} parent=5 // pred_check_branch
      %282 = sbr.rel (%p279) target = $region40
    $region39: #{up_forward.4} parent=5 // pred_region
      %s283 = ssub.s32 %s14, 1
      %p284 = scmp.lt.s32.totalorder %s23, 1
      %s285 = scalar_select %p284, %s23, 1
      %p286 = scmp.lt.s32.totalorder %s24, 0
      %s287 = scalar_select %p286, %s24, 0
      %s288 = smul.addr %s287, 4
      %s289 = smul.addr %s285, 4
      %s290 = sadd.s32 %s288, %s289
      %s291 = smul.addr %s290, 4
      %s292 = scalar_lea.vmem %s0, %s291
      %p293 = pneg %p54
      %p294 = pneg %p51
      %p295 = scmp.lt.s32.totalorder %s24, 0
      %s296 = scalar_select %p295, %s24, 0
      %s297 = smul.addr %s296, 8
      %s298 = scalar_lea.vmem %s1, %s297
      %p299 = pneg %p80
      %p300 = pneg %p77
      %p301 = scmp.lt.s32.totalorder %s24, 0
      %s302 = scalar_select %p301, %s24, 0
      %s303 = smul.addr %s302, 4
      %s304 = scalar_lea.vmem %s2, %s303
      %p305 = pneg %p106
      %p306 = pneg %p103
      %p307 = pneg %p127
      %p308 = pneg %p124
      %p309 = pneg %p148
      %p310 = pneg %p145
      %p311 = pneg %p174
      %p312 = pneg %p171
      %p313 = scmp.lt.s32.totalorder %s23, 1
      %s314 = scalar_select %p313, %s23, 1
      %s315 = smul.addr %s314, 3
      %s316 = smul.addr %s315, 4
      %s317 = scalar_lea.vmem %s5, %s316
      %p318 = pneg %p200
      %p319 = pneg %p197
      %p320 = scmp.lt.s32.totalorder %s23, 1
      %s321 = scalar_select %p320, %s23, 1
      %s322 = smul.addr %s321, 8
      %s323 = scalar_lea.vmem %s6, %s322
      %p324 = pneg %p226
      %p325 = pneg %p223
      %p326 = scmp.lt.s32.totalorder %s23, 1
      %s327 = scalar_select %p326, %s23, 1
      %s328 = smul.addr %s327, 8
      %s329 = scalar_lea.vmem %s7, %s328
      %p330 = scmp.lt.s32.totalorder %s23, 1
      %s331 = scalar_select %p330, %s23, 1
      %p332 = scmp.lt.s32.totalorder %s24, 0
      %s333 = scalar_select %p332, %s24, 0
      %s334 = smul.addr %s333, 4
      %s335 = smul.addr %s331, 4
      %s336 = sadd.s32 %s334, %s335
      %s337 = smul.addr %s336, 4
      %s338 = scalar_lea.vmem %s0, %s337
      %p339 = scmp.lt.s32.totalorder %s24, 0
      %s340 = scalar_select %p339, %s24, 0
      %s341 = smul.addr %s340, 8
      %s342 = scalar_lea.vmem %s1, %s341
      %p343 = scmp.lt.s32.totalorder %s24, 0
      %s344 = scalar_select %p343, %s24, 0
      %s345 = smul.addr %s344, 4
      %s346 = scalar_lea.vmem %s2, %s345
      %p347 = scmp.lt.s32.totalorder %s23, 1
      %s348 = scalar_select %p347, %s23, 1
      %s349 = smul.addr %s348, 3
      %s350 = smul.addr %s349, 4
      %s351 = scalar_lea.vmem %s5, %s350
      %p352 = scmp.lt.s32.totalorder %s23, 1
      %s353 = scalar_select %p352, %s23, 1
      %s354 = smul.addr %s353, 8
      %s355 = scalar_lea.vmem %s6, %s354
      %p356 = scmp.lt.s32.totalorder %s23, 1
      %s357 = scalar_select %p356, %s23, 1
      %s358 = smul.addr %s357, 8
      %s359 = scalar_lea.vmem %s7, %s358
      %p361 = scmp.eq.s32.totalorder %s24, 0
      // Predicated region
      $region41: #{up_forward.4} parent=39 // pred_check
        %p362 = pneg %p361
      $region42: #{up_forward.4} parent=39 // pred_check_branch
        %364 = sbr.rel (%p362) target = $region44
      $region43: #{up_forward.4} parent=39 // pred_region
        %365 = vst [vmem:[#allocation2] sm:$0xff] 0.0
        %366 = vst [vmem:[#allocation2 + $0x8] sm:$0xff] 0.0
        %vm367 = vcmask 556032
        %368 = vst.msk [vmem:[#allocation2 + $0x10] sm:$0xff] %vm367, 0.0
      $region44: #{up_forward.4} parent=39 // pred_fallthru
        _
      %v369 = vld [vmem:[%s338] sm:$0xff]
      %v370 = vld [vmem:[%s338 + $0x8] sm:$0xff]
      %v371 = vunpack.c.l.bf16 %v369
      %v372 = vunpack.c.h.bf16 %v369
      %v373 = vunpack.c.l.bf16 %v370
      %v374 = vunpack.c.h.bf16 %v370
      %v375 = vld [vmem:[%s342] sm:$0xff]
      %377 = vset.pattern.permute.xlu0 0
      %378 = vperm.xlu0 %377, %v375
      %v379 = vpop.permute.xlu0 %378
      %v381 = vsub.f32 %v371, %v379
      %v382 = vsub.f32 %v372, %v379
      %v383 = vsub.f32 %v373, %v379
      %v384 = vsub.f32 %v374, %v379
      %v385 = vmax.f32 %v381, 0.0
      %v386 = vmax.f32 %v382, 0.0
      %v387 = vmax.f32 %v383, 0.0
      %v388 = vmax.f32 %v384, 0.0
      %v389 = vld [vmem:[%s3] sm:$0xf]
      %v391 = vperm.slane %v389, 0
      %v392 = vperm.slane %v389, 1
      %v393 = vperm.slane %v389, 2
      %v394 = vperm.slane %v389, 3
      %v399 = vmul.f32 %v385, %v391
      %v400 = vmul.f32 %v386, %v392
      %v401 = vmul.f32 %v387, %v393
      %v402 = vmul.f32 %v388, %v394
      %v403 = vpack.c.bf16 %v400, %v399
      %v404 = vpack.c.bf16 %v402, %v401
      %405 = vst [vmem:[#allocation3] sm:$0xff] %v403
      %406 = vst [vmem:[#allocation3 + $0x8] sm:$0xff] %v404
      %v407 = vld [vmem:[#allocation2] sm:$0xff]
      %v408 = vld [vmem:[#allocation2 + $0x8] sm:$0xff]
      %v409 = vld [vmem:[#allocation2 + $0x10] sm:$0xff]
      %v410 = vld [vmem:[#allocation3] sm:$0xff]
      %v411 = vld [vmem:[#allocation3 + $0x8] sm:$0xff]
      %v412 = vld [vmem:[%s346] sm:$0xf]
      %v415 = vunpack.c.l.b16 %v410
      %v416 = vunpack.c.h.b16 %v410
      %v417 = vunpack.c.l.b16 %v411
      %v418 = vunpack.c.h.b16 %v411
      %v419 = vpack.c.b16 %v415, %v415
      %v420 = vpack.c.b16 %v416, %v416
      %v421 = vpack.c.b16 %v417, %v417
      %v422 = vpack.c.b16 %v418, %v418
      %423 = vrot.lane.b32.xlu0 %v419, 19
      %v424 = vpop.permute.xlu0 %423
      %425 = vrot.lane.b32.xlu0 %v420, 19
      %v426 = vpop.permute.xlu0 %425
      %427 = vrot.lane.b32.xlu0 %v421, 19
      %v428 = vpop.permute.xlu0 %427
      %429 = vrot.lane.b32.xlu0 %v422, 19
      %v430 = vpop.permute.xlu0 %429
      %vm431 = vcmask 154624
      %v432 = vsel %vm431, %v424, %v426
      %v433 = vsel %vm431, %v426, %v428
      %v434 = vsel %vm431, %v428, %v430
      %vm435 = vcmask 64512
      %v437 = vsel %vm435, %v412, 0
      %vm439 = vcmask 1043456
      %v441 = vsel %vm439, %v432, 0
      %v444 = vsel %vm439, %v433, 0
      %v447 = vsel %vm439, %v434, 0
      %449 = vmatpush.bf16.msra.mxu0 0
      %450 = vmatpush.bf16.msra.mxu0 0
      %451 = vmatpush.bf16.msra.mxu0 0
      %452 = vmatpush.bf16.msra.mxu0 0
      %453 = vmatpush.bf16.msra.mxu0 0
      %454 = vmatpush.bf16.msra.mxu0 0
      %455 = vmatpush.bf16.msra.mxu0 0
      %456 = vmatpush.bf16.msra.mxu0 %v441
      %457 = vmatmul.bf16.gmra.mxu0 %v437
      %v458 = vpop.f32.mrf.mxu0
      %v459 = vadd.f32 0.0, %v458
      %v460 = vpop.f32.mrf.mxu0
      %461 = vdwg.mxu0
      %462 = vmatpush.bf16.msra.mxu0 0
      %463 = vmatpush.bf16.msra.mxu0 0
      %464 = vmatpush.bf16.msra.mxu0 0
      %465 = vmatpush.bf16.msra.mxu0 0
      %466 = vmatpush.bf16.msra.mxu0 0
      %467 = vmatpush.bf16.msra.mxu0 0
      %468 = vmatpush.bf16.msra.mxu0 0
      %469 = vmatpush.bf16.msra.mxu0 %v444
      %470 = vmatmul.bf16.gmra.mxu0 %v437
      %v471 = vpop.f32.mrf.mxu0
      %v472 = vadd.f32 0.0, %v471
      %v473 = vpop.f32.mrf.mxu0
      %474 = vdwg.mxu0
      %475 = vmatpush.bf16.msra.mxu0 0
      %476 = vmatpush.bf16.msra.mxu0 0
      %477 = vmatpush.bf16.msra.mxu0 0
      %478 = vmatpush.bf16.msra.mxu0 0
      %479 = vmatpush.bf16.msra.mxu0 0
      %480 = vmatpush.bf16.msra.mxu0 0
      %481 = vmatpush.bf16.msra.mxu0 0
      %482 = vmatpush.bf16.msra.mxu0 %v447
      %483 = vmatmul.bf16.gmra.mxu0 %v437
      %v484 = vpop.f32.mrf.mxu0
      %v485 = vadd.f32 0.0, %v484
      %v486 = vpop.f32.mrf.mxu0
      %487 = vdwg.mxu0
      %v488 = vadd.f32 %v407, %v459
      %v489 = vadd.f32 %v408, %v472
      %v490 = vadd.f32 %v409, %v485
      %s491 = scalar_lea.vmem %s346, 4
      %v492 = vld [vmem:[%s491] sm:$0xf]
      %493 = vrot.lane.b32.xlu0 %v419, 18
      %v494 = vpop.permute.xlu0 %493
      %495 = vrot.lane.b32.xlu0 %v420, 18
      %v496 = vpop.permute.xlu0 %495
      %497 = vrot.lane.b32.xlu0 %v421, 18
      %v498 = vpop.permute.xlu0 %497
      %499 = vrot.lane.b32.xlu0 %v422, 18
      %v500 = vpop.permute.xlu0 %499
      %vm501 = vcmask 146432
      %v502 = vsel %vm501, %v494, %v496
      %v503 = vsel %vm501, %v496, %v498
      %v504 = vsel %vm501, %v498, %v500
      %v506 = vsel %vm435, %v492, 0
      %v509 = vsel %vm439, %v502, 0
      %v512 = vsel %vm439, %v503, 0
      %v515 = vsel %vm439, %v504, 0
      %517 = vmatpush.bf16.msra.mxu0 0
      %518 = vmatpush.bf16.msra.mxu0 0
      %519 = vmatpush.bf16.msra.mxu0 0
      %520 = vmatpush.bf16.msra.mxu0 0
      %521 = vmatpush.bf16.msra.mxu0 0
      %522 = vmatpush.bf16.msra.mxu0 0
      %523 = vmatpush.bf16.msra.mxu0 0
      %524 = vmatpush.bf16.msra.mxu0 %v509
      %525 = vmatmul.bf16.gmra.mxu0 %v506
      %v526 = vpop.f32.mrf.mxu0
      %v527 = vadd.f32 0.0, %v526
      %v528 = vpop.f32.mrf.mxu0
      %529 = vdwg.mxu0
      %530 = vmatpush.bf16.msra.mxu0 0
      %531 = vmatpush.bf16.msra.mxu0 0
      %532 = vmatpush.bf16.msra.mxu0 0
      %533 = vmatpush.bf16.msra.mxu0 0
      %534 = vmatpush.bf16.msra.mxu0 0
      %535 = vmatpush.bf16.msra.mxu0 0
      %536 = vmatpush.bf16.msra.mxu0 0
      %537 = vmatpush.bf16.msra.mxu0 %v512
      %538 = vmatmul.bf16.gmra.mxu0 %v506
      %v539 = vpop.f32.mrf.mxu0
      %v540 = vadd.f32 0.0, %v539
      %v541 = vpop.f32.mrf.mxu0
      %542 = vdwg.mxu0
      %543 = vmatpush.bf16.msra.mxu0 0
      %544 = vmatpush.bf16.msra.mxu0 0
      %545 = vmatpush.bf16.msra.mxu0 0
      %546 = vmatpush.bf16.msra.mxu0 0
      %547 = vmatpush.bf16.msra.mxu0 0
      %548 = vmatpush.bf16.msra.mxu0 0
      %549 = vmatpush.bf16.msra.mxu0 0
      %550 = vmatpush.bf16.msra.mxu0 %v515
      %551 = vmatmul.bf16.gmra.mxu0 %v506
      %v552 = vpop.f32.mrf.mxu0
      %v553 = vadd.f32 0.0, %v552
      %v554 = vpop.f32.mrf.mxu0
      %555 = vdwg.mxu0
      %v556 = vadd.f32 %v488, %v527
      %v557 = vadd.f32 %v489, %v540
      %v558 = vadd.f32 %v490, %v553
      %s559 = scalar_lea.vmem %s346, 8
      %v560 = vld [vmem:[%s559] sm:$0xf]
      %561 = vrot.lane.b32.xlu0 %v419, 17
      %v562 = vpop.permute.xlu0 %561
      %563 = vrot.lane.b32.xlu0 %v420, 17
      %v564 = vpop.permute.xlu0 %563
      %565 = vrot.lane.b32.xlu0 %v421, 17
      %v566 = vpop.permute.xlu0 %565
      %567 = vrot.lane.b32.xlu0 %v422, 17
      %v568 = vpop.permute.xlu0 %567
      %vm569 = vcmask 138240
      %v570 = vsel %vm569, %v562, %v564
      %v571 = vsel %vm569, %v564, %v566
      %v572 = vsel %vm569, %v566, %v568
      %v574 = vsel %vm435, %v560, 0
      %v577 = vsel %vm439, %v570, 0
      %v580 = vsel %vm439, %v571, 0
      %v583 = vsel %vm439, %v572, 0
      %585 = vmatpush.bf16.msra.mxu0 0
      %586 = vmatpush.bf16.msra.mxu0 0
      %587 = vmatpush.bf16.msra.mxu0 0
      %588 = vmatpush.bf16.msra.mxu0 0
      %589 = vmatpush.bf16.msra.mxu0 0
      %590 = vmatpush.bf16.msra.mxu0 0
      %591 = vmatpush.bf16.msra.mxu0 0
      %592 = vmatpush.bf16.msra.mxu0 %v577
      %593 = vmatmul.bf16.gmra.mxu0 %v574
      %v594 = vpop.f32.mrf.mxu0
      %v595 = vadd.f32 0.0, %v594
      %v596 = vpop.f32.mrf.mxu0
      %597 = vdwg.mxu0
      %598 = vmatpush.bf16.msra.mxu0 0
      %599 = vmatpush.bf16.msra.mxu0 0
      %600 = vmatpush.bf16.msra.mxu0 0
      %601 = vmatpush.bf16.msra.mxu0 0
      %602 = vmatpush.bf16.msra.mxu0 0
      %603 = vmatpush.bf16.msra.mxu0 0
      %604 = vmatpush.bf16.msra.mxu0 0
      %605 = vmatpush.bf16.msra.mxu0 %v580
      %606 = vmatmul.bf16.gmra.mxu0 %v574
      %v607 = vpop.f32.mrf.mxu0
      %v608 = vadd.f32 0.0, %v607
      %v609 = vpop.f32.mrf.mxu0
      %610 = vdwg.mxu0
      %611 = vmatpush.bf16.msra.mxu0 0
      %612 = vmatpush.bf16.msra.mxu0 0
      %613 = vmatpush.bf16.msra.mxu0 0
      %614 = vmatpush.bf16.msra.mxu0 0
      %615 = vmatpush.bf16.msra.mxu0 0
      %616 = vmatpush.bf16.msra.mxu0 0
      %617 = vmatpush.bf16.msra.mxu0 0
      %618 = vmatpush.bf16.msra.mxu0 %v583
      %619 = vmatmul.bf16.gmra.mxu0 %v574
      %v620 = vpop.f32.mrf.mxu0
      %v621 = vadd.f32 0.0, %v620
      %v622 = vpop.f32.mrf.mxu0
      %623 = vdwg.mxu0
      %v624 = vadd.f32 %v556, %v595
      %v625 = vadd.f32 %v557, %v608
      %v626 = vadd.f32 %v558, %v621
      %s627 = scalar_lea.vmem %s346, 12
      %v628 = vld [vmem:[%s627] sm:$0xf]
      %629 = vrot.lane.b32.xlu0 %v419, 1
      %v630 = vpop.permute.xlu0 %629
      %631 = vrot.lane.b32.xlu0 %v420, 1
      %v632 = vpop.permute.xlu0 %631
      %633 = vrot.lane.b32.xlu0 %v421, 1
      %v634 = vpop.permute.xlu0 %633
      %635 = vrot.lane.b32.xlu0 %v422, 1
      %v636 = vpop.permute.xlu0 %635
      %vm637 = vcmask 7168
      %v638 = vsel %vm637, %v630, %v632
      %v639 = vsel %vm637, %v632, %v634
      %v640 = vsel %vm637, %v634, %v636
      %v642 = vsel %vm435, %v628, 0
      %v645 = vsel %vm439, %v638, 0
      %v648 = vsel %vm439, %v639, 0
      %v651 = vsel %vm439, %v640, 0
      %653 = vmatpush.bf16.msra.mxu0 0
      %654 = vmatpush.bf16.msra.mxu0 0
      %655 = vmatpush.bf16.msra.mxu0 0
      %656 = vmatpush.bf16.msra.mxu0 0
      %657 = vmatpush.bf16.msra.mxu0 0
      %658 = vmatpush.bf16.msra.mxu0 0
      %659 = vmatpush.bf16.msra.mxu0 0
      %660 = vmatpush.bf16.msra.mxu0 %v645
      %661 = vmatmul.bf16.gmra.mxu0 %v642
      %v662 = vpop.f32.mrf.mxu0
      %v663 = vadd.f32 0.0, %v662
      %v664 = vpop.f32.mrf.mxu0
      %665 = vdwg.mxu0
      %666 = vmatpush.bf16.msra.mxu0 0
      %667 = vmatpush.bf16.msra.mxu0 0
      %668 = vmatpush.bf16.msra.mxu0 0
      %669 = vmatpush.bf16.msra.mxu0 0
      %670 = vmatpush.bf16.msra.mxu0 0
      %671 = vmatpush.bf16.msra.mxu0 0
      %672 = vmatpush.bf16.msra.mxu0 0
      %673 = vmatpush.bf16.msra.mxu0 %v648
      %674 = vmatmul.bf16.gmra.mxu0 %v642
      %v675 = vpop.f32.mrf.mxu0
      %v676 = vadd.f32 0.0, %v675
      %v677 = vpop.f32.mrf.mxu0
      %678 = vdwg.mxu0
      %679 = vmatpush.bf16.msra.mxu0 0
      %680 = vmatpush.bf16.msra.mxu0 0
      %681 = vmatpush.bf16.msra.mxu0 0
      %682 = vmatpush.bf16.msra.mxu0 0
      %683 = vmatpush.bf16.msra.mxu0 0
      %684 = vmatpush.bf16.msra.mxu0 0
      %685 = vmatpush.bf16.msra.mxu0 0
      %686 = vmatpush.bf16.msra.mxu0 %v651
      %687 = vmatmul.bf16.gmra.mxu0 %v642
      %v688 = vpop.f32.mrf.mxu0
      %v689 = vadd.f32 0.0, %v688
      %v690 = vpop.f32.mrf.mxu0
      %691 = vdwg.mxu0
      %v692 = vadd.f32 %v624, %v663
      %v693 = vadd.f32 %v625, %v676
      %v694 = vadd.f32 %v626, %v689
      %v695 = vld [vmem:[#allocation3 + $0x4] sm:$0xff]
      %v696 = vld [vmem:[#allocation3 + $0xc] sm:$0xf]
      %s697 = scalar_lea.vmem %s346, 16
      %v698 = vld [vmem:[%s697] sm:$0xf]
      %v701 = vunpack.c.l.b16 %v695
      %v702 = vunpack.c.h.b16 %v695
      %v703 = vunpack.c.l.b16 %v696
      %v704 = vpack.c.b16 %v701, %v701
      %v705 = vpack.c.b16 %v702, %v702
      %v706 = vpack.c.b16 %v703, %v703
      %v708 = vsel %vm435, %v698, 0
      %v711 = vsel %vm439, %v704, 0
      %v714 = vsel %vm439, %v705, 0
      %v717 = vsel %vm439, %v706, 0
      %719 = vmatpush.bf16.msra.mxu0 0
      %720 = vmatpush.bf16.msra.mxu0 0
      %721 = vmatpush.bf16.msra.mxu0 0
      %722 = vmatpush.bf16.msra.mxu0 0
      %723 = vmatpush.bf16.msra.mxu0 0
      %724 = vmatpush.bf16.msra.mxu0 0
      %725 = vmatpush.bf16.msra.mxu0 0
      %726 = vmatpush.bf16.msra.mxu0 %v711
      %727 = vmatmul.bf16.gmra.mxu0 %v708
      %v728 = vpop.f32.mrf.mxu0
      %v729 = vadd.f32 0.0, %v728
      %v730 = vpop.f32.mrf.mxu0
      %731 = vdwg.mxu0
      %732 = vmatpush.bf16.msra.mxu0 0
      %733 = vmatpush.bf16.msra.mxu0 0
      %734 = vmatpush.bf16.msra.mxu0 0
      %735 = vmatpush.bf16.msra.mxu0 0
      %736 = vmatpush.bf16.msra.mxu0 0
      %737 = vmatpush.bf16.msra.mxu0 0
      %738 = vmatpush.bf16.msra.mxu0 0
      %739 = vmatpush.bf16.msra.mxu0 %v714
      %740 = vmatmul.bf16.gmra.mxu0 %v708
      %v741 = vpop.f32.mrf.mxu0
      %v742 = vadd.f32 0.0, %v741
      %v743 = vpop.f32.mrf.mxu0
      %744 = vdwg.mxu0
      %745 = vmatpush.bf16.msra.mxu0 0
      %746 = vmatpush.bf16.msra.mxu0 0
      %747 = vmatpush.bf16.msra.mxu0 0
      %748 = vmatpush.bf16.msra.mxu0 0
      %749 = vmatpush.bf16.msra.mxu0 0
      %750 = vmatpush.bf16.msra.mxu0 0
      %751 = vmatpush.bf16.msra.mxu0 0
      %752 = vmatpush.bf16.msra.mxu0 %v717
      %753 = vmatmul.bf16.gmra.mxu0 %v708
      %v754 = vpop.f32.mrf.mxu0
      %v755 = vadd.f32 0.0, %v754
      %v756 = vpop.f32.mrf.mxu0
      %757 = vdwg.mxu0
      %v758 = vadd.f32 %v692, %v729
      %v759 = vadd.f32 %v693, %v742
      %v760 = vadd.f32 %v694, %v755
      %s761 = scalar_lea.vmem %s346, 20
      %v762 = vld [vmem:[%s761] sm:$0xf]
      %763 = vrot.lane.b32.xlu0 %v704, 127
      %v764 = vpop.permute.xlu0 %763
      %765 = vrot.lane.b32.xlu0 %v705, 127
      %v766 = vpop.permute.xlu0 %765
      %767 = vrot.lane.b32.xlu0 %v706, 127
      %v768 = vpop.permute.xlu0 %767
      %vm769 = vcmask 1039360
      %v770 = vsel %vm769, %v764, %v766
      %v771 = vsel %vm769, %v766, %v768
      %v773 = vsel %vm435, %v762, 0
      %v776 = vsel %vm439, %v770, 0
      %v779 = vsel %vm439, %v771, 0
      %v782 = vsel %vm439, %v768, 0
      %784 = vmatpush.bf16.msra.mxu0 0
      %785 = vmatpush.bf16.msra.mxu0 0
      %786 = vmatpush.bf16.msra.mxu0 0
      %787 = vmatpush.bf16.msra.mxu0 0
      %788 = vmatpush.bf16.msra.mxu0 0
      %789 = vmatpush.bf16.msra.mxu0 0
      %790 = vmatpush.bf16.msra.mxu0 0
      %791 = vmatpush.bf16.msra.mxu0 %v776
      %792 = vmatmul.bf16.gmra.mxu0 %v773
      %v793 = vpop.f32.mrf.mxu0
      %v794 = vadd.f32 0.0, %v793
      %v795 = vpop.f32.mrf.mxu0
      %796 = vdwg.mxu0
      %797 = vmatpush.bf16.msra.mxu0 0
      %798 = vmatpush.bf16.msra.mxu0 0
      %799 = vmatpush.bf16.msra.mxu0 0
      %800 = vmatpush.bf16.msra.mxu0 0
      %801 = vmatpush.bf16.msra.mxu0 0
      %802 = vmatpush.bf16.msra.mxu0 0
      %803 = vmatpush.bf16.msra.mxu0 0
      %804 = vmatpush.bf16.msra.mxu0 %v779
      %805 = vmatmul.bf16.gmra.mxu0 %v773
      %v806 = vpop.f32.mrf.mxu0
      %v807 = vadd.f32 0.0, %v806
      %v808 = vpop.f32.mrf.mxu0
      %809 = vdwg.mxu0
      %810 = vmatpush.bf16.msra.mxu0 0
      %811 = vmatpush.bf16.msra.mxu0 0
      %812 = vmatpush.bf16.msra.mxu0 0
      %813 = vmatpush.bf16.msra.mxu0 0
      %814 = vmatpush.bf16.msra.mxu0 0
      %815 = vmatpush.bf16.msra.mxu0 0
      %816 = vmatpush.bf16.msra.mxu0 0
      %817 = vmatpush.bf16.msra.mxu0 %v782
      %818 = vmatmul.bf16.gmra.mxu0 %v773
      %v819 = vpop.f32.mrf.mxu0
      %v820 = vadd.f32 0.0, %v819
      %v821 = vpop.f32.mrf.mxu0
      %822 = vdwg.mxu0
      %v823 = vadd.f32 %v758, %v794
      %v824 = vadd.f32 %v759, %v807
      %v825 = vadd.f32 %v760, %v820
      %s826 = scalar_lea.vmem %s346, 24
      %v827 = vld [vmem:[%s826] sm:$0xf]
      %828 = vrot.lane.b32.xlu0 %v704, 111
      %v829 = vpop.permute.xlu0 %828
      %830 = vrot.lane.b32.xlu0 %v705, 111
      %v831 = vpop.permute.xlu0 %830
      %832 = vrot.lane.b32.xlu0 %v706, 111
      %v833 = vpop.permute.xlu0 %832
      %vm834 = vcmask 908288
      %v835 = vsel %vm834, %v829, %v831
      %v836 = vsel %vm834, %v831, %v833
      %v838 = vsel %vm435, %v827, 0
      %v841 = vsel %vm439, %v835, 0
      %v844 = vsel %vm439, %v836, 0
      %v847 = vsel %vm439, %v833, 0
      %849 = vmatpush.bf16.msra.mxu0 0
      %850 = vmatpush.bf16.msra.mxu0 0
      %851 = vmatpush.bf16.msra.mxu0 0
      %852 = vmatpush.bf16.msra.mxu0 0
      %853 = vmatpush.bf16.msra.mxu0 0
      %854 = vmatpush.bf16.msra.mxu0 0
      %855 = vmatpush.bf16.msra.mxu0 0
      %856 = vmatpush.bf16.msra.mxu0 %v841
      %857 = vmatmul.bf16.gmra.mxu0 %v838
      %v858 = vpop.f32.mrf.mxu0
      %v859 = vadd.f32 0.0, %v858
      %v860 = vpop.f32.mrf.mxu0
      %861 = vdwg.mxu0
      %862 = vmatpush.bf16.msra.mxu0 0
      %863 = vmatpush.bf16.msra.mxu0 0
      %864 = vmatpush.bf16.msra.mxu0 0
      %865 = vmatpush.bf16.msra.mxu0 0
      %866 = vmatpush.bf16.msra.mxu0 0
      %867 = vmatpush.bf16.msra.mxu0 0
      %868 = vmatpush.bf16.msra.mxu0 0
      %869 = vmatpush.bf16.msra.mxu0 %v844
      %870 = vmatmul.bf16.gmra.mxu0 %v838
      %v871 = vpop.f32.mrf.mxu0
      %v872 = vadd.f32 0.0, %v871
      %v873 = vpop.f32.mrf.mxu0
      %874 = vdwg.mxu0
      %875 = vmatpush.bf16.msra.mxu0 0
      %876 = vmatpush.bf16.msra.mxu0 0
      %877 = vmatpush.bf16.msra.mxu0 0
      %878 = vmatpush.bf16.msra.mxu0 0
      %879 = vmatpush.bf16.msra.mxu0 0
      %880 = vmatpush.bf16.msra.mxu0 0
      %881 = vmatpush.bf16.msra.mxu0 0
      %882 = vmatpush.bf16.msra.mxu0 %v847
      %883 = vmatmul.bf16.gmra.mxu0 %v838
      %v884 = vpop.f32.mrf.mxu0
      %v885 = vadd.f32 0.0, %v884
      %v886 = vpop.f32.mrf.mxu0
      %887 = vdwg.mxu0
      %v888 = vadd.f32 %v823, %v859
      %v889 = vadd.f32 %v824, %v872
      %v890 = vadd.f32 %v825, %v885
      %s891 = scalar_lea.vmem %s346, 28
      %v892 = vld [vmem:[%s891] sm:$0xf]
      %893 = vrot.lane.b32.xlu0 %v704, 110
      %v894 = vpop.permute.xlu0 %893
      %895 = vrot.lane.b32.xlu0 %v705, 110
      %v896 = vpop.permute.xlu0 %895
      %897 = vrot.lane.b32.xlu0 %v706, 110
      %v898 = vpop.permute.xlu0 %897
      %vm899 = vcmask 900096
      %v900 = vsel %vm899, %v894, %v896
      %v901 = vsel %vm899, %v896, %v898
      %v903 = vsel %vm435, %v892, 0
      %v906 = vsel %vm439, %v900, 0
      %v909 = vsel %vm439, %v901, 0
      %v912 = vsel %vm439, %v898, 0
      %914 = vmatpush.bf16.msra.mxu0 0
      %915 = vmatpush.bf16.msra.mxu0 0
      %916 = vmatpush.bf16.msra.mxu0 0
      %917 = vmatpush.bf16.msra.mxu0 0
      %918 = vmatpush.bf16.msra.mxu0 0
      %919 = vmatpush.bf16.msra.mxu0 0
      %920 = vmatpush.bf16.msra.mxu0 0
      %921 = vmatpush.bf16.msra.mxu0 %v906
      %922 = vmatmul.bf16.gmra.mxu0 %v903
      %v923 = vpop.f32.mrf.mxu0
      %v924 = vadd.f32 0.0, %v923
      %v925 = vpop.f32.mrf.mxu0
      %926 = vdwg.mxu0
      %927 = vmatpush.bf16.msra.mxu0 0
      %928 = vmatpush.bf16.msra.mxu0 0
      %929 = vmatpush.bf16.msra.mxu0 0
      %930 = vmatpush.bf16.msra.mxu0 0
      %931 = vmatpush.bf16.msra.mxu0 0
      %932 = vmatpush.bf16.msra.mxu0 0
      %933 = vmatpush.bf16.msra.mxu0 0
      %934 = vmatpush.bf16.msra.mxu0 %v909
      %935 = vmatmul.bf16.gmra.mxu0 %v903
      %v936 = vpop.f32.mrf.mxu0
      %v937 = vadd.f32 0.0, %v936
      %v938 = vpop.f32.mrf.mxu0
      %939 = vdwg.mxu0
      %940 = vmatpush.bf16.msra.mxu0 0
      %941 = vmatpush.bf16.msra.mxu0 0
      %942 = vmatpush.bf16.msra.mxu0 0
      %943 = vmatpush.bf16.msra.mxu0 0
      %944 = vmatpush.bf16.msra.mxu0 0
      %945 = vmatpush.bf16.msra.mxu0 0
      %946 = vmatpush.bf16.msra.mxu0 0
      %947 = vmatpush.bf16.msra.mxu0 %v912
      %948 = vmatmul.bf16.gmra.mxu0 %v903
      %v949 = vpop.f32.mrf.mxu0
      %v950 = vadd.f32 0.0, %v949
      %v951 = vpop.f32.mrf.mxu0
      %952 = vdwg.mxu0
      %v953 = vadd.f32 %v888, %v924
      %v954 = vadd.f32 %v889, %v937
      %v955 = vadd.f32 %v890, %v950
      %s956 = scalar_lea.vmem %s346, 32
      %v957 = vld [vmem:[%s956] sm:$0xf]
      %958 = vrot.lane.b32.xlu0 %v704, 109
      %v959 = vpop.permute.xlu0 %958
      %960 = vrot.lane.b32.xlu0 %v705, 109
      %v961 = vpop.permute.xlu0 %960
      %962 = vrot.lane.b32.xlu0 %v706, 109
      %v963 = vpop.permute.xlu0 %962
      %vm964 = vcmask 891904
      %v965 = vsel %vm964, %v959, %v961
      %v966 = vsel %vm964, %v961, %v963
      %v968 = vsel %vm435, %v957, 0
      %v971 = vsel %vm439, %v965, 0
      %v974 = vsel %vm439, %v966, 0
      %v977 = vsel %vm439, %v963, 0
      %979 = vmatpush.bf16.msra.mxu0 0
      %980 = vmatpush.bf16.msra.mxu0 0
      %981 = vmatpush.bf16.msra.mxu0 0
      %982 = vmatpush.bf16.msra.mxu0 0
      %983 = vmatpush.bf16.msra.mxu0 0
      %984 = vmatpush.bf16.msra.mxu0 0
      %985 = vmatpush.bf16.msra.mxu0 0
      %986 = vmatpush.bf16.msra.mxu0 %v971
      %987 = vmatmul.bf16.gmra.mxu0 %v968
      %v988 = vpop.f32.mrf.mxu0
      %v989 = vadd.f32 0.0, %v988
      %v990 = vpop.f32.mrf.mxu0
      %991 = vdwg.mxu0
      %992 = vmatpush.bf16.msra.mxu0 0
      %993 = vmatpush.bf16.msra.mxu0 0
      %994 = vmatpush.bf16.msra.mxu0 0
      %995 = vmatpush.bf16.msra.mxu0 0
      %996 = vmatpush.bf16.msra.mxu0 0
      %997 = vmatpush.bf16.msra.mxu0 0
      %998 = vmatpush.bf16.msra.mxu0 0
      %999 = vmatpush.bf16.msra.mxu0 %v974
      %1000 = vmatmul.bf16.gmra.mxu0 %v968
      %v1001 = vpop.f32.mrf.mxu0
      %v1002 = vadd.f32 0.0, %v1001
      %v1003 = vpop.f32.mrf.mxu0
      %1004 = vdwg.mxu0
      %1005 = vmatpush.bf16.msra.mxu0 0
      %1006 = vmatpush.bf16.msra.mxu0 0
      %1007 = vmatpush.bf16.msra.mxu0 0
      %1008 = vmatpush.bf16.msra.mxu0 0
      %1009 = vmatpush.bf16.msra.mxu0 0
      %1010 = vmatpush.bf16.msra.mxu0 0
      %1011 = vmatpush.bf16.msra.mxu0 0
      %1012 = vmatpush.bf16.msra.mxu0 %v977
      %1013 = vmatmul.bf16.gmra.mxu0 %v968
      %v1014 = vpop.f32.mrf.mxu0
      %v1015 = vadd.f32 0.0, %v1014
      %v1016 = vpop.f32.mrf.mxu0
      %1017 = vdwg.mxu0
      %v1018 = vadd.f32 %v953, %v989
      %v1019 = vadd.f32 %v954, %v1002
      %v1020 = vadd.f32 %v955, %v1015
      %1021 = vst [vmem:[#allocation2] sm:$0xff] %v1018
      %1022 = vst [vmem:[#allocation2 + $0x8] sm:$0xff] %v1019
      %vm1023 = vcmask 556032
      %1024 = vst.msk [vmem:[#allocation2 + $0x10] sm:$0xff] %vm1023, %v1020
      // Predicated region
      $region45: #{up_forward.4} parent=39 // pred_check
        %p1025 = pneg %p361
      $region46: #{up_forward.4} parent=39 // pred_check_branch
        %1027 = sbr.rel (%p1025) target = $region48
      $region47: #{up_forward.4} parent=39 // pred_region
        %v1028 = vld [vmem:[#allocation2] sm:$0xff]
        %v1029 = vld [vmem:[#allocation2 + $0x8] sm:$0xff]
        %v1030 = vld [vmem:[#allocation2 + $0x10] sm:$0xff]
        %v1031 = vld [vmem:[%s4] sm:$0x7]
        %v1033 = vperm.slane %v1031, 0
        %v1034 = vperm.slane %v1031, 1
        %v1035 = vperm.slane %v1031, 2
        %v1039 = vmul.f32 %v1028, %v1033
        %v1040 = vmul.f32 %v1029, %v1034
        %v1041 = vmul.f32 %v1030, %v1035
        %v1042 = vadd.f32 %v1039, %v1040
        %v1043 = vsel %vm1023, %v1041, 0.0
        %v1044 = vadd.f32 %v1042, %v1043
        %1045 = vadd.xlane.f32.xlu0 %v1044
        %v1046 = vpop.xlane.xlu0 %1045
        %vm1047 = vcmask 7168
        %1048 = vst.msk [vmem:[%s355] sm:$0xff] %vm1047, %v1046
        %v1049 = vmul.f32 %v1039, %v1028
        %v1050 = vmul.f32 %v1040, %v1029
        %v1051 = vmul.f32 %v1041, %v1030
        %v1052 = vadd.f32 %v1049, %v1050
        %v1053 = vsel %vm1023, %v1051, 0.0
        %v1054 = vadd.f32 %v1052, %v1053
        %1055 = vadd.xlane.f32.xlu0 %v1054
        %v1056 = vpop.xlane.xlu0 %1055
        %1057 = vst.msk [vmem:[%s359] sm:$0xff] %vm1047, %v1056
        %v1058 = vpack.c.bf16 %v1029, %v1028
        %v1059 = vpack.c.bf16 %v1030, %v1030
        %1060 = vst [vmem:[%s351] sm:$0xff] %v1058
        %vm1061 = vcmask 551936
        %1062 = vst.msk [vmem:[%s351 + $0x8] sm:$0xf] %vm1061, %v1059
      $region48: #{up_forward.4} parent=39 // pred_fallthru
        _
      %p1063 = scmp.lt.s32.totalorder %s23, 1
      %s1064 = scalar_select %p1063, %s23, 1
      %s1065 = smul.addr %s1064, 3
      %s1066 = smul.addr %s1065, 4
      %s1067 = scalar_lea.vmem %s5, %s1066
      %p1068 = scmp.lt.s32.totalorder %s23, 1
      %s1069 = scalar_select %p1068, %s23, 1
      %s1070 = smul.addr %s1069, 8
      %s1071 = scalar_lea.vmem %s6, %s1070
      %p1072 = scmp.lt.s32.totalorder %s23, 1
      %s1073 = scalar_select %p1072, %s23, 1
      %s1074 = smul.addr %s1073, 8
      %s1075 = scalar_lea.vmem %s7, %s1074
      // Predicated region
      $region49: #{up_forward.4} parent=39 // pred_check
        %p1076 = pneg %p171
      $region50: #{up_forward.4} parent=39 // pred_check_branch
        %1078 = sbr.rel (%p1076) target = $region52
      $region51: #{up_forward.4} parent=39 // pred_region
        _
      $region52: #{up_forward.4} parent=39 // pred_fallthru
        _
      // Predicated region
      $region53: #{up_forward.4} parent=39 // pred_check
        %p1079 = pneg %p197
      $region54: #{up_forward.4} parent=39 // pred_check_branch
        %1081 = sbr.rel (%p1079) target = $region56
      $region55: #{up_forward.4} parent=39 // pred_region
        _
      $region56: #{up_forward.4} parent=39 // pred_fallthru
        _
      // Predicated region
      $region57: #{up_forward.4} parent=39 // pred_check
        %p1082 = pneg %p223
      $region58: #{up_forward.4} parent=39 // pred_check_branch
        %1084 = sbr.rel (%p1082) target = $region60
      $region59: #{up_forward.4} parent=39 // pred_region
        _
      $region60: #{up_forward.4} parent=39 // pred_fallthru
        _
    $region40: #{up_forward.4} parent=5 // pred_fallthru
      _
    %p1085 = scmp.le.s32.totalorder 2, %s14
    // Predicated region
    $region61: #{up_forward.4} parent=5 // pred_check
      %p1086 = pneg %p1085
    $region62: #{up_forward.4} parent=5 // pred_check_branch
      %1088 = sbr.rel (%p1086) target = $region64
    $region63: #{up_forward.4} parent=5 // pred_region
      %s1089 = ssub.s32 %s14, 2
      // Predicated region
      $region65: #{up_forward.4} parent=63 // pred_check
        %p1090 = pneg %p177
      $region66: #{up_forward.4} parent=63 // pred_check_branch
        %1092 = sbr.rel (%p1090) target = $region68
      $region67: #{up_forward.4} parent=63 // pred_region
        %p1093 = scmp.lt.s32.totalorder %s25, 1
        %s1094 = scalar_select %p1093, %s25, 1
        %s1095 = smul.addr %s1094, 3
        %s1096 = smul.addr %s1095, 4
        %s1097 = scalar_lea.vmem %s5, %s1096
      $region68: #{up_forward.4} parent=63 // pred_fallthru
        _
      // Predicated region
      $region69: #{up_forward.4} parent=63 // pred_check
        %p1098 = pneg %p203
      $region70: #{up_forward.4} parent=63 // pred_check_branch
        %1100 = sbr.rel (%p1098) target = $region72
      $region71: #{up_forward.4} parent=63 // pred_region
        %p1101 = scmp.lt.s32.totalorder %s25, 1
        %s1102 = scalar_select %p1101, %s25, 1
        %s1103 = smul.addr %s1102, 8
        %s1104 = scalar_lea.vmem %s6, %s1103
      $region72: #{up_forward.4} parent=63 // pred_fallthru
        _
      // Predicated region
      $region73: #{up_forward.4} parent=63 // pred_check
        %p1105 = pneg %p229
      $region74: #{up_forward.4} parent=63 // pred_check_branch
        %1107 = sbr.rel (%p1105) target = $region76
      $region75: #{up_forward.4} parent=63 // pred_region
        %p1108 = scmp.lt.s32.totalorder %s25, 1
        %s1109 = scalar_select %p1108, %s25, 1
        %s1110 = smul.addr %s1109, 8
        %s1111 = scalar_lea.vmem %s7, %s1110
      $region76: #{up_forward.4} parent=63 // pred_fallthru
        _
    $region64: #{up_forward.4} parent=5 // pred_fallthru
      _
  $region6: #{up_forward.4} parent=0 // loop_footer
    %s18 = sadd.s32 1, %s14
  $region7: #{up_forward.4} parent=0 // loop_footer_branch
    %13 = sbr.rel target = $region3
  $region8: #{up_forward.4} parent=0 // loop_exit
    _

</llo_original>
